<compile_context>
chip_gen: v5e
topology: v5e:2x2
jax: 0.10.0
libtpu: 0.0.40
codegen_flags: <defaults>
</compile_context>

<pallas_src>
import jax
import jax.numpy as jnp
import numpy as np
from jax.experimental import pallas as pl
from jax.experimental.pallas import tpu as pltpu

KH, KW = 3, 3          # kernel size (paddings=False branch)
PAD_H = 1              # ConvTranspose2d padding (1, 0)
BN_EPS = 1e-5


def conv_stats_kernel(x_ref, w_ref, b_ref, sel_ref, y_ref, stats_ref, acc_ref):
    # x_ref:     (H, W*Cin)       one batch of input rows, channels innermost
    # w_ref:     (KH, W*Cin, M)   banded transposed-conv weights, M = Wo*Cout
    # b_ref:     (1, M)           conv bias tiled across the Wo output columns
    # sel_ref:   (M, Cout)        0/1 channel-selection matrix for BN statistics
    # y_ref:     (H, M)           conv + bias output (pre-BN), lane-dense
    # stats_ref: (2, Cout)        per-batch [sum, sum-of-squares] partials
    # acc_ref:   VMEM scratch (H, M) f32
    H = x_ref.shape[0]
    x = x_ref[...]

    # Row scatter of the transposed conv: oh = ih - 1 + kh  (slice-accumulate, no zero pads)
    # kh = 1: output row oh <- input row oh
    acc_ref[...] = jnp.dot(x, w_ref[1], preferred_element_type=jnp.float32)
    if H > 1:
        # kh = 0: output row oh <- input row oh + 1
        acc_ref[0:H - 1, :] += jnp.dot(x[1:H, :], w_ref[0],
                                       preferred_element_type=jnp.float32)
        # kh = 2: output row oh <- input row oh - 1
        acc_ref[1:H, :] += jnp.dot(x[0:H - 1, :], w_ref[2],
                                   preferred_element_type=jnp.float32)

    y = acc_ref[...] + b_ref[...]            # (H, M) + (1, M)
    y_ref[...] = y

    # Per-channel partial sums for BatchNorm. The (1, M) @ (M, Cout) select-matmul keeps
    # everything lane-dense (no minor-dim reshape). It is tiny -> HIGHEST precision.
    ysum = jnp.sum(y, axis=0, keepdims=True)             # (1, M)
    ysq = jnp.sum(y * y, axis=0, keepdims=True)          # (1, M)
    sel = sel_ref[...]
    stats_ref[0:1, :] = jnp.dot(ysum, sel, preferred_element_type=jnp.float32,
                                precision=jax.lax.Precision.HIGHEST)   # (1, Cout)
    stats_ref[1:2, :] = jnp.dot(ysq, sel, preferred_element_type=jnp.float32,
                                precision=jax.lax.Precision.HIGHEST)   # (1, Cout)


def bn_elu_kernel(y_ref, scale_ref, shift_ref, o_ref):
    # y_ref: (H, M); scale/shift: (1, M) (per-channel values tiled across Wo); o_ref: (H, M)
    v = y_ref[...] * scale_ref[...] + shift_ref[...]
    # ELU, alpha = 1.0 (exp goes to the EUP; min() avoids overflow on the dead branch)
    o_ref[...] = jnp.where(v > 0, v, jnp.exp(jnp.minimum(v, 0.0)) - 1.0)


def _band_weights(weight, W, Wo):
    """band[kh][iw*Cin+ci, ow*Cout+co] = weight[ci, co, kh, kw] with ow = 2*iw + kw.

    Built as a single einsum against a constant 0/1 placement tensor P[kw, iw, ow]
    (kron of the column-placement pattern with the (Cin, Cout) kernel slice).
    """
    Cin, Cout = weight.shape[0], weight.shape[1]
    w_t = jnp.transpose(weight, (2, 3, 0, 1)).astype(jnp.float32)   # (KH, KW, Cin, Cout)
    P = np.zeros((KW, W, Wo), np.float32)
    iw = np.arange(W)
    for kw in range(KW):
        P[kw, iw, 2 * iw + kw] = 1.0                                # ow = 2*iw + kw < Wo
    band = jnp.einsum('kwo,hkic->hwioc', jnp.asarray(P), w_t)       # (KH, W, Cin, Wo, Cout)
    return band.reshape(KH, W * Cin, Wo * Cout)


@jax.jit
def spec_decoder_forward(x_nchw, weight, bias, gamma, beta):
    """x_nchw: (B, Cin, H, W); weight: (Cin, Cout, 3, 3) (PyTorch ConvTranspose2d layout)."""
    B, Cin, H, W = x_nchw.shape
    Cout = weight.shape[1]
    Wo = 2 * W + 1
    M = Wo * Cout

    # Layout plumbing in XLA: NCHW -> (B, H, W*Cin) rows, channels innermost.
    x_rows = jnp.transpose(x_nchw, (0, 2, 3, 1)).reshape(B, H, W * Cin).astype(jnp.float32)
    w_band = _band_weights(weight, W, Wo)                               # (KH, W*Cin, M)
    bias_m = jnp.tile(bias.astype(jnp.float32), Wo).reshape(1, M)       # (1, M)
    sel = jnp.tile(jnp.eye(Cout, dtype=jnp.float32), (Wo, 1))           # (M, Cout)

    # Pass 1: transposed conv + bias, plus per-batch BN partial statistics.
    y_flat, stats = pl.pallas_call(
        conv_stats_kernel,
        out_shape=(jax.ShapeDtypeStruct((B, H, M), jnp.float32),
                   jax.ShapeDtypeStruct((B, 2, Cout), jnp.float32)),
        grid=(B,),
        in_specs=[
            pl.BlockSpec((None, H, W * Cin), lambda b: (b, 0, 0)),
            pl.BlockSpec((KH, W * Cin, M), lambda b: (0, 0, 0)),
            pl.BlockSpec((1, M), lambda b: (0, 0)),
            pl.BlockSpec((M, Cout), lambda b: (0, 0)),
        ],
        out_specs=(
            pl.BlockSpec((None, H, M), lambda b: (b, 0, 0)),
            pl.BlockSpec((None, 2, Cout), lambda b: (b, 0, 0)),
        ),
        scratch_shapes=[pltpu.VMEM((H, M), jnp.float32)],
        compiler_params=pltpu.CompilerParams(dimension_semantics=("parallel",)),
    )(x_rows, w_band, bias_m, sel)

    # Combine partial statistics (Cout-sized -> trivial) into BN scale/shift.
    # Note: single-pass E[y^2]-mean^2 variance (fine at these magnitudes/tolerances).
    cnt = float(B * H * Wo)
    s = jnp.sum(stats[:, 0, :], axis=0)
    ss = jnp.sum(stats[:, 1, :], axis=0)
    mean = s / cnt
    var = ss / cnt - mean * mean                 # biased variance (training-mode BN)
    inv = jax.lax.rsqrt(var + BN_EPS)
    scale = gamma.astype(jnp.float32) * inv
    shift = beta.astype(jnp.float32) - mean * scale
    scale_m = jnp.tile(scale, Wo).reshape(1, M)
    shift_m = jnp.tile(shift, Wo).reshape(1, M)

    # Pass 2: apply BatchNorm (scale/shift) + ELU elementwise on the lane-dense layout.
    out_flat = pl.pallas_call(
        bn_elu_kernel,
        out_shape=jax.ShapeDtypeStruct((B, H, M), jnp.float32),
        grid=(B,),
        in_specs=[
            pl.BlockSpec((None, H, M), lambda b: (b, 0, 0)),
            pl.BlockSpec((1, M), lambda b: (0, 0)),
            pl.BlockSpec((1, M), lambda b: (0, 0)),
        ],
        out_specs=pl.BlockSpec((None, H, M), lambda b: (b, 0, 0)),
        compiler_params=pltpu.CompilerParams(dimension_semantics=("parallel",)),
    )(y_flat, scale_m, shift_m)

    # Back to NCHW (layout plumbing).
    return jnp.transpose(out_flat.reshape(B, H, Wo, Cout), (0, 3, 1, 2))


def reference_forward(x, w, b, gamma, beta):
    """Plain numpy reference of the PyTorch forward (NCHW)."""
    x = np.asarray(x, np.float64)
    w = np.asarray(w, np.float64)
    b = np.asarray(b, np.float64)
    gamma = np.asarray(gamma, np.float64)
    beta = np.asarray(beta, np.float64)
    B, Cin, H, W = x.shape
    Cout = w.shape[1]
    Ho, Wo = H, 2 * W + 1
    y = np.zeros((B, Cout, Ho, Wo))
    for n in range(B):
        for ih in range(H):
            for iw in range(W):
                for kh in range(KH):
                    for kw in range(KW):
                        oh = ih - PAD_H + kh
                        ow = 2 * iw + kw
                        if 0 <= oh < Ho and 0 <= ow < Wo:
                            y[n, :, oh, ow] += x[n, :, ih, iw] @ w[:, :, kh, kw]
    y += b[None, :, None, None]
    mean = y.mean(axis=(0, 2, 3), keepdims=True)
    var = y.var(axis=(0, 2, 3), keepdims=True)  # biased, as in training-mode BN
    yn = (y - mean) / np.sqrt(var + BN_EPS)
    yn = yn * gamma[None, :, None, None] + beta[None, :, None, None]
    return np.where(yn > 0, yn, np.exp(np.minimum(yn, 0.0)) - 1.0)


if __name__ == "__main__":
    key = jax.random.PRNGKey(0)
    B, Cin, Cout, H, W = 2, 4, 8, 16, 16
    k1, k2, k3, k4, k5 = jax.random.split(key, 5)

    x = jax.random.normal(k1, (B, Cin, H, W), jnp.float32)
    fan_in = Cin * KH * KW
    weight = jax.random.normal(k2, (Cin, Cout, KH, KW), jnp.float32) / np.sqrt(fan_in)
    bias = 0.1 * jax.random.normal(k3, (Cout,), jnp.float32)
    gamma = 1.0 + 0.1 * jax.random.normal(k4, (Cout,), jnp.float32)
    beta = 0.1 * jax.random.normal(k5, (Cout,), jnp.float32)

    out = spec_decoder_forward(x, weight, bias, gamma, beta)
    out = jax.block_until_ready(out)

    ref = reference_forward(np.asarray(x), np.asarray(weight), np.asarray(bias),
                            np.asarray(gamma), np.asarray(beta))
    np.testing.assert_allclose(np.asarray(out), ref, rtol=1e-2, atol=1e-2)
    print("KERNEL_OK")
</pallas_src>

<mosaic_0001>
module attributes {stable_mosaic.version = 11 : i64} {
  func.func @conv_stats_kernel(%arg0: i32, %arg1: memref<1x16x64xf32, #tpu.memory_space<vmem>>, %arg2: memref<3x64x264xf32, #tpu.memory_space<vmem>>, %arg3: memref<1x264xf32, #tpu.memory_space<vmem>>, %arg4: memref<264x8xf32, #tpu.memory_space<vmem>>, %arg5: memref<1x16x264xf32, #tpu.memory_space<vmem>>, %arg6: memref<1x2x8xf32, #tpu.memory_space<vmem>>, %arg7: memref<16x264xf32, #tpu.memory_space<vmem>>) attributes {dimension_semantics = [#tpu.dimension_semantics<parallel>], iteration_bounds = array<i64: 2>, scalar_prefetch = 0 : i64, scratch_operands = 1 : i64, tpu.core_type = #tpu.core_type<tc>, window_params = [{transform_indices = @transform_0, window_bounds = array<i64: 1, 16, 64>}, {pipeline_mode = #tpu.pipeline_mode<synchronous>, transform_indices = @transform_1, window_bounds = array<i64: 3, 64, 264>}, {pipeline_mode = #tpu.pipeline_mode<synchronous>, transform_indices = @transform_2, window_bounds = array<i64: 1, 264>}, {pipeline_mode = #tpu.pipeline_mode<synchronous>, transform_indices = @transform_3, window_bounds = array<i64: 264, 8>}, {transform_indices = @transform_4, window_bounds = array<i64: 1, 16, 264>}, {transform_indices = @transform_5, window_bounds = array<i64: 1, 2, 8>}]} {
    %c0 = arith.constant 0 : index
    %c0_0 = arith.constant 0 : index
    %c0_1 = arith.constant 0 : index
    %0 = vector.load %arg1[%c0, %c0_0, %c0_1] : memref<1x16x64xf32, #tpu.memory_space<vmem>>, vector<1x16x64xf32>
    %1 = vector.shape_cast %0 : vector<1x16x64xf32> to vector<16x64xf32>
    %c1 = arith.constant 1 : index
    %c0_2 = arith.constant 0 : index
    %c0_3 = arith.constant 0 : index
    %2 = vector.load %arg2[%c1, %c0_2, %c0_3] : memref<3x64x264xf32, #tpu.memory_space<vmem>>, vector<1x64x264xf32>
    %3 = vector.shape_cast %2 : vector<1x64x264xf32> to vector<64x264xf32>
    %cst = arith.constant dense<0.000000e+00> : vector<16x264xf32>
    %4 = tpu.matmul %1, %3, %cst {dimension_numbers = #tpu.dot_dimension_numbers<[1], [0], [0], [1], [0, 0, 1, 1], [], []>} : vector<16x64xf32>, vector<64x264xf32>, vector<16x264xf32> -> vector<16x264xf32>
    %c0_4 = arith.constant 0 : index
    %c0_5 = arith.constant 0 : index
    %5 = vector.load %arg7[%c0_4, %c0_5] : memref<16x264xf32, #tpu.memory_space<vmem>>, vector<16x264xf32>
    tpu.vector_store %arg7[%c0_4, %c0_5], %4 {strides = array<i32>} : memref<16x264xf32, #tpu.memory_space<vmem>>, vector<16x264xf32>,
    %c0_6 = arith.constant 0 : index
    %c0_7 = arith.constant 0 : index
    %6 = vector.load %arg7[%c0_6, %c0_7] : memref<16x264xf32, #tpu.memory_space<vmem>>, vector<15x264xf32>
    %7 = vector.extract_strided_slice %1 {offsets = [1, 0], sizes = [15, 64], strides = [1, 1]} : vector<16x64xf32> to vector<15x64xf32>
    %c0_8 = arith.constant 0 : index
    %c0_9 = arith.constant 0 : index
    %c0_10 = arith.constant 0 : index
    %8 = vector.load %arg2[%c0_8, %c0_9, %c0_10] : memref<3x64x264xf32, #tpu.memory_space<vmem>>, vector<1x64x264xf32>
    %9 = vector.shape_cast %8 : vector<1x64x264xf32> to vector<64x264xf32>
    %cst_11 = arith.constant dense<0.000000e+00> : vector<15x264xf32>
    %10 = tpu.matmul %7, %9, %cst_11 {dimension_numbers = #tpu.dot_dimension_numbers<[1], [0], [0], [1], [0, 0, 1, 1], [], []>} : vector<15x64xf32>, vector<64x264xf32>, vector<15x264xf32> -> vector<15x264xf32>
    %11 = arith.addf %6, %10 : vector<15x264xf32>
    %c0_12 = arith.constant 0 : index
    %c0_13 = arith.constant 0 : index
    %12 = vector.load %arg7[%c0_12, %c0_13] : memref<16x264xf32, #tpu.memory_space<vmem>>, vector<15x264xf32>
    tpu.vector_store %arg7[%c0_12, %c0_13], %11 {strides = array<i32>} : memref<16x264xf32, #tpu.memory_space<vmem>>, vector<15x264xf32>,
    %c1_14 = arith.constant 1 : index
    %c0_15 = arith.constant 0 : index
    %13 = vector.load %arg7[%c1_14, %c0_15] : memref<16x264xf32, #tpu.memory_space<vmem>>, vector<15x264xf32>
    %14 = vector.extract_strided_slice %1 {offsets = [0, 0], sizes = [15, 64], strides = [1, 1]} : vector<16x64xf32> to vector<15x64xf32>
    %c2 = arith.constant 2 : index
    %c0_16 = arith.constant 0 : index
    %c0_17 = arith.constant 0 : index
    %15 = vector.load %arg2[%c2, %c0_16, %c0_17] : memref<3x64x264xf32, #tpu.memory_space<vmem>>, vector<1x64x264xf32>
    %16 = vector.shape_cast %15 : vector<1x64x264xf32> to vector<64x264xf32>
    %cst_18 = arith.constant dense<0.000000e+00> : vector<15x264xf32>
    %17 = tpu.matmul %14, %16, %cst_18 {dimension_numbers = #tpu.dot_dimension_numbers<[1], [0], [0], [1], [0, 0, 1, 1], [], []>} : vector<15x64xf32>, vector<64x264xf32>, vector<15x264xf32> -> vector<15x264xf32>
    %18 = arith.addf %13, %17 : vector<15x264xf32>
    %c1_19 = arith.constant 1 : index
    %c0_20 = arith.constant 0 : index
    %19 = vector.load %arg7[%c1_19, %c0_20] : memref<16x264xf32, #tpu.memory_space<vmem>>, vector<15x264xf32>
    tpu.vector_store %arg7[%c1_19, %c0_20], %18 {strides = array<i32>} : memref<16x264xf32, #tpu.memory_space<vmem>>, vector<15x264xf32>,
    %c0_21 = arith.constant 0 : index
    %c0_22 = arith.constant 0 : index
    %20 = vector.load %arg7[%c0_21, %c0_22] : memref<16x264xf32, #tpu.memory_space<vmem>>, vector<16x264xf32>
    %c0_23 = arith.constant 0 : index
    %c0_24 = arith.constant 0 : index
    %21 = vector.load %arg3[%c0_23, %c0_24] : memref<1x264xf32, #tpu.memory_space<vmem>>, vector<1x264xf32>
    %22 = vector.broadcast %21 : vector<1x264xf32> to vector<16x264xf32>
    %23 = arith.addf %20, %22 : vector<16x264xf32>
    %c0_25 = arith.constant 0 : index
    %c0_26 = arith.constant 0 : index
    %c0_27 = arith.constant 0 : index
    %24 = vector.load %arg5[%c0_25, %c0_26, %c0_27] : memref<1x16x264xf32, #tpu.memory_space<vmem>>, vector<1x16x264xf32>
    %25 = vector.shape_cast %24 : vector<1x16x264xf32> to vector<16x264xf32>
    %26 = vector.shape_cast %23 : vector<16x264xf32> to vector<1x16x264xf32>
    tpu.vector_store %arg5[%c0_25, %c0_26, %c0_27], %26 {strides = array<i32>} : memref<1x16x264xf32, #tpu.memory_space<vmem>>, vector<1x16x264xf32>,
    %cst_28 = arith.constant dense<0.000000e+00> : vector<264xf32>
    %27 = vector.multi_reduction <add>, %23, %cst_28 [0] : vector<16x264xf32> to vector<264xf32>
    %28 = vector.shape_cast %27 : vector<264xf32> to vector<1x264xf32>
    %29 = arith.mulf %23, %23 : vector<16x264xf32>
    %cst_29 = arith.constant dense<0.000000e+00> : vector<264xf32>
    %30 = vector.multi_reduction <add>, %29, %cst_29 [0] : vector<16x264xf32> to vector<264xf32>
    %31 = vector.shape_cast %30 : vector<264xf32> to vector<1x264xf32>
    %c0_30 = arith.constant 0 : index
    %c0_31 = arith.constant 0 : index
    %32 = vector.load %arg4[%c0_30, %c0_31] : memref<264x8xf32, #tpu.memory_space<vmem>>, vector<264x8xf32>
    %cst_32 = arith.constant dense<0.000000e+00> : vector<1x8xf32>
    %33 = tpu.matmul %28, %32, %cst_32 {dimension_numbers = #tpu.dot_dimension_numbers<[1], [0], [0], [1], [0, 0, 1, 1], [], []>, precision = #tpu.contract_precision<fp32>} : vector<1x264xf32>, vector<264x8xf32>, vector<1x8xf32> -> vector<1x8xf32>
    %c0_33 = arith.constant 0 : index
    %c0_34 = arith.constant 0 : index
    %c0_35 = arith.constant 0 : index
    %34 = vector.load %arg6[%c0_33, %c0_34, %c0_35] : memref<1x2x8xf32, #tpu.memory_space<vmem>>, vector<1x1x8xf32>
    %35 = vector.shape_cast %34 : vector<1x1x8xf32> to vector<1x8xf32>
    %36 = vector.shape_cast %33 : vector<1x8xf32> to vector<1x1x8xf32>
    tpu.vector_store %arg6[%c0_33, %c0_34, %c0_35], %36 {strides = array<i32>} : memref<1x2x8xf32, #tpu.memory_space<vmem>>, vector<1x1x8xf32>,
    %cst_36 = arith.constant dense<0.000000e+00> : vector<1x8xf32>
    %37 = tpu.matmul %31, %32, %cst_36 {dimension_numbers = #tpu.dot_dimension_numbers<[1], [0], [0], [1], [0, 0, 1, 1], [], []>, precision = #tpu.contract_precision<fp32>} : vector<1x264xf32>, vector<264x8xf32>, vector<1x8xf32> -> vector<1x8xf32>
    %c0_37 = arith.constant 0 : index
    %c1_38 = arith.constant 1 : index
    %c0_39 = arith.constant 0 : index
    %38 = vector.load %arg6[%c0_37, %c1_38, %c0_39] : memref<1x2x8xf32, #tpu.memory_space<vmem>>, vector<1x1x8xf32>
    %39 = vector.shape_cast %38 : vector<1x1x8xf32> to vector<1x8xf32>
    %40 = vector.shape_cast %37 : vector<1x8xf32> to vector<1x1x8xf32>
    tpu.vector_store %arg6[%c0_37, %c1_38, %c0_39], %40 {strides = array<i32>} : memref<1x2x8xf32, #tpu.memory_space<vmem>>, vector<1x1x8xf32>,
    return
  }
  func.func @transform_0(%arg0: i32) -> (i32, i32, i32) {
    %c0_i32 = arith.constant 0 : i32
    %c0_i32_0 = arith.constant 0 : i32
    %c0_i32_1 = arith.constant 0 : i32
    return %arg0, %c0_i32, %c0_i32_0 : i32, i32, i32
  }
  func.func @transform_1(%arg0: i32) -> (i32, i32, i32) {
    %c0_i32 = arith.constant 0 : i32
    %c0_i32_0 = arith.constant 0 : i32
    %c0_i32_1 = arith.constant 0 : i32
    %c0_i32_2 = arith.constant 0 : i32
    return %c0_i32, %c0_i32_0, %c0_i32_1 : i32, i32, i32
  }
  func.func @transform_2(%arg0: i32) -> (i32, i32) {
    %c0_i32 = arith.constant 0 : i32
    %c0_i32_0 = arith.constant 0 : i32
    %c0_i32_1 = arith.constant 0 : i32
    return %c0_i32, %c0_i32_0 : i32, i32
  }
  func.func @transform_3(%arg0: i32) -> (i32, i32) {
    %c0_i32 = arith.constant 0 : i32
    %c0_i32_0 = arith.constant 0 : i32
    %c0_i32_1 = arith.constant 0 : i32
    return %c0_i32, %c0_i32_0 : i32, i32
  }
  func.func @transform_4(%arg0: i32) -> (i32, i32, i32) {
    %c0_i32 = arith.constant 0 : i32
    %c0_i32_0 = arith.constant 0 : i32
    %c0_i32_1 = arith.constant 0 : i32
    return %arg0, %c0_i32, %c0_i32_0 : i32, i32, i32
  }
  func.func @transform_5(%arg0: i32) -> (i32, i32, i32) {
    %c0_i32 = arith.constant 0 : i32
    %c0_i32_0 = arith.constant 0 : i32
    %c0_i32_1 = arith.constant 0 : i32
    return %arg0, %c0_i32, %c0_i32_0 : i32, i32, i32
  }
}

module attributes {stable_mosaic.version = 11 : i64} {
  func.func @bn_elu_kernel(%arg0: i32, %arg1: memref<1x16x264xf32, #tpu.memory_space<vmem>>, %arg2: memref<1x264xf32, #tpu.memory_space<vmem>>, %arg3: memref<1x264xf32, #tpu.memory_space<vmem>>, %arg4: memref<1x16x264xf32, #tpu.memory_space<vmem>>) attributes {dimension_semantics = [#tpu.dimension_semantics<parallel>], iteration_bounds = array<i64: 2>, scalar_prefetch = 0 : i64, scratch_operands = 0 : i64, tpu.core_type = #tpu.core_type<tc>, window_params = [{transform_indices = @transform_0, window_bounds = array<i64: 1, 16, 264>}, {pipeline_mode = #tpu.pipeline_mode<synchronous>, transform_indices = @transform_1, window_bounds = array<i64: 1, 264>}, {pipeline_mode = #tpu.pipeline_mode<synchronous>, transform_indices = @transform_2, window_bounds = array<i64: 1, 264>}, {transform_indices = @transform_3, window_bounds = array<i64: 1, 16, 264>}]} {
    %c0 = arith.constant 0 : index
    %c0_0 = arith.constant 0 : index
    %c0_1 = arith.constant 0 : index
    %0 = vector.load %arg1[%c0, %c0_0, %c0_1] : memref<1x16x264xf32, #tpu.memory_space<vmem>>, vector<1x16x264xf32>
    %1 = vector.shape_cast %0 : vector<1x16x264xf32> to vector<16x264xf32>
    %c0_2 = arith.constant 0 : index
    %c0_3 = arith.constant 0 : index
    %2 = vector.load %arg2[%c0_2, %c0_3] : memref<1x264xf32, #tpu.memory_space<vmem>>, vector<1x264xf32>
    %3 = vector.broadcast %2 : vector<1x264xf32> to vector<16x264xf32>
    %4 = arith.mulf %1, %3 : vector<16x264xf32>
    %c0_4 = arith.constant 0 : index
    %c0_5 = arith.constant 0 : index
    %5 = vector.load %arg3[%c0_4, %c0_5] : memref<1x264xf32, #tpu.memory_space<vmem>>, vector<1x264xf32>
    %6 = vector.broadcast %5 : vector<1x264xf32> to vector<16x264xf32>
    %7 = arith.addf %4, %6 : vector<16x264xf32>
    %cst = arith.constant 0.000000e+00 : f32
    %8 = vector.broadcast %cst : f32 to vector<16x264xf32>
    %9 = arith.cmpf ogt, %7, %8 : vector<16x264xf32>
    %cst_6 = arith.constant 0.000000e+00 : f32
    %10 = vector.broadcast %cst_6 : f32 to vector<16x264xf32>
    %11 = arith.minimumf %7, %10 : vector<16x264xf32>
    %12 = math.exp %11 : vector<16x264xf32>
    %cst_7 = arith.constant 1.000000e+00 : f32
    %13 = vector.broadcast %cst_7 : f32 to vector<16x264xf32>
    %14 = arith.subf %12, %13 : vector<16x264xf32>
    %15 = arith.select %9, %7, %14 : vector<16x264xi1>, vector<16x264xf32>
    %c0_8 = arith.constant 0 : index
    %c0_9 = arith.constant 0 : index
    %c0_10 = arith.constant 0 : index
    %16 = vector.load %arg4[%c0_8, %c0_9, %c0_10] : memref<1x16x264xf32, #tpu.memory_space<vmem>>, vector<1x16x264xf32>
    %17 = vector.shape_cast %16 : vector<1x16x264xf32> to vector<16x264xf32>
    %18 = vector.shape_cast %15 : vector<16x264xf32> to vector<1x16x264xf32>
    tpu.vector_store %arg4[%c0_8, %c0_9, %c0_10], %18 {strides = array<i32>} : memref<1x16x264xf32, #tpu.memory_space<vmem>>, vector<1x16x264xf32>,
    return
  }
  func.func @transform_0(%arg0: i32) -> (i32, i32, i32) {
    %c0_i32 = arith.constant 0 : i32
    %c0_i32_0 = arith.constant 0 : i32
    %c0_i32_1 = arith.constant 0 : i32
    return %arg0, %c0_i32, %c0_i32_0 : i32, i32, i32
  }
  func.func @transform_1(%arg0: i32) -> (i32, i32) {
    %c0_i32 = arith.constant 0 : i32
    %c0_i32_0 = arith.constant 0 : i32
    %c0_i32_1 = arith.constant 0 : i32
    return %c0_i32, %c0_i32_0 : i32, i32
  }
  func.func @transform_2(%arg0: i32) -> (i32, i32) {
    %c0_i32 = arith.constant 0 : i32
    %c0_i32_0 = arith.constant 0 : i32
    %c0_i32_1 = arith.constant 0 : i32
    return %c0_i32, %c0_i32_0 : i32, i32
  }
  func.func @transform_3(%arg0: i32) -> (i32, i32, i32) {
    %c0_i32 = arith.constant 0 : i32
    %c0_i32_0 = arith.constant 0 : i32
    %c0_i32_1 = arith.constant 0 : i32
    return %arg0, %c0_i32, %c0_i32_0 : i32, i32, i32
  }
}

</mosaic_0001>

<llo_original>
// kernel: tile.23
$region0: #{tile.23}
  #allocation0 [shape = 's32[1]{0}', space=sflag, size = 0x4, scoped, tag = 'scoped memory for tile.23']
  %s0 = inlined_call_operand.vmem [shape: f32[8], index: 0, kind: input, shape index: {}]
  %s1 = inlined_call_operand.vmem [shape: f32[33,8], index: 1, kind: output, shape index: {}]
  // Predicated region
  $region2: #{tile.23} parent=0 // pred_check
    _
  $region3: #{tile.23} parent=0 // pred_check_branch
    %3 = sbr.rel (0) target = $region5
  $region4: #{tile.23} parent=0 // pred_region
    _
  $region5: #{tile.23} parent=0 // pred_fallthru
    _
  %v4 = vld [vmem:[%s0] ss:$0 sm:$0xff]
  %5 = vst [vmem:[%s1] sm:$0xff] %v4
  %s6 = scalar_lea.vmem %s1, 8
  %7 = vst [vmem:[%s6] sm:$0xff] %v4
  %s8 = scalar_lea.vmem %s1, 16
  %9 = vst [vmem:[%s8] sm:$0xff] %v4
  %s10 = scalar_lea.vmem %s1, 24
  %11 = vst [vmem:[%s10] sm:$0xff] %v4
  %s12 = scalar_lea.vmem %s1, 32
  %13 = vst [vmem:[%s12] sm:$0xff] %v4

// kernel: tile.24
$region0: #{tile.24}
  %s0 = inlined_call_operand.vmem [shape: f32[33,8], index: 0, kind: input, shape index: {}]
  %s1 = inlined_call_operand.vmem [shape: f32[1,264], index: 1, kind: output, shape index: {}]
  $region1: #{tile.24} parent=0
    #allocation0 [shape = 'u8[12288]{0}', space=vmem, size = 0x3000, scoped, tag = 'scoped mem for output reshape']
    %s2 = smov 3
    %v3 = vld [vmem:[%s0] ss:$16 sm:%s2]
    %s4 = scalar_lea.vmem %s0, 30
    %v5 = vld [vmem:[%s4] sm:$0x4]
    %vm6 = vcmask 1042434
    %v7 = vsel %vm6, %v5, %v3
    %vm8 = vcmask 64512
    %9 = vst.msk [vmem:[#allocation0] ss:$8 sm:$0x7] %vm8, %v7
    %s10 = scalar_lea.vmem %s0, 15
    %s11 = smov 3
    %v12 = vld [vmem:[%s10] ss:$16 sm:%s11]
    %13 = vrot.lane.b32.xlu0 %v12, 120
    %v14 = vpop.permute.xlu0 %13
    %vm15 = vcmask 1048512
    %16 = vst.msk [vmem:[#allocation0] ss:$8 sm:$0x3] %vm15, %v14
    %s17 = scalar_lea.vmem %s0, 14
    %s18 = smov 3
    %v19 = vld [vmem:[%s17] ss:$16 sm:%s18]
    %20 = vrot.lane.b32.xlu0 %v19, 112
    %v21 = vpop.permute.xlu0 %20
    %vm22 = vcmask 982912
    %23 = vst.msk [vmem:[#allocation0] ss:$8 sm:$0x3] %vm22, %v21
    %s24 = scalar_lea.vmem %s0, 13
    %s25 = smov 3
    %v26 = vld [vmem:[%s24] ss:$16 sm:%s25]
    %27 = vrot.lane.b32.xlu0 %v26, 104
    %v28 = vpop.permute.xlu0 %27
    %vm29 = vcmask 917312
    %30 = vst.msk [vmem:[#allocation0] ss:$8 sm:$0x3] %vm29, %v28
    %s31 = scalar_lea.vmem %s0, 12
    %s32 = smov 3
    %v33 = vld [vmem:[%s31] ss:$16 sm:%s32]
    %34 = vrot.lane.b32.xlu0 %v33, 96
    %v35 = vpop.permute.xlu0 %34
    %vm36 = vcmask 851712
    %37 = vst.msk [vmem:[#allocation0] ss:$8 sm:$0x3] %vm36, %v35
    %s38 = scalar_lea.vmem %s0, 11
    %s39 = smov 3
    %v40 = vld [vmem:[%s38] ss:$16 sm:%s39]
    %41 = vrot.lane.b32.xlu0 %v40, 88
    %v42 = vpop.permute.xlu0 %41
    %vm43 = vcmask 786112
    %44 = vst.msk [vmem:[#allocation0] ss:$8 sm:$0x3] %vm43, %v42
    %s45 = scalar_lea.vmem %s0, 10
    %s46 = smov 3
    %v47 = vld [vmem:[%s45] ss:$16 sm:%s46]
    %48 = vrot.lane.b32.xlu0 %v47, 80
    %v49 = vpop.permute.xlu0 %48
    %vm50 = vcmask 720512
    %51 = vst.msk [vmem:[#allocation0] ss:$8 sm:$0x3] %vm50, %v49
    %s52 = scalar_lea.vmem %s0, 9
    %s53 = smov 3
    %v54 = vld [vmem:[%s52] ss:$16 sm:%s53]
    %55 = vrot.lane.b32.xlu0 %v54, 72
    %v56 = vpop.permute.xlu0 %55
    %vm57 = vcmask 654912
    %58 = vst.msk [vmem:[#allocation0] ss:$8 sm:$0x3] %vm57, %v56
    %s59 = scalar_lea.vmem %s0, 8
    %s60 = smov 3
    %v61 = vld [vmem:[%s59] ss:$16 sm:%s60]
    %62 = vrot.lane.b32.xlu0 %v61, 64
    %v63 = vpop.permute.xlu0 %62
    %vm64 = vcmask 589312
    %65 = vst.msk [vmem:[#allocation0] ss:$8 sm:$0x3] %vm64, %v63
    %s66 = scalar_lea.vmem %s0, 7
    %s67 = smov 3
    %v68 = vld [vmem:[%s66] ss:$16 sm:%s67]
    %69 = vrot.lane.b32.xlu0 %v68, 56
    %v70 = vpop.permute.xlu0 %69
    %vm71 = vcmask 523712
    %72 = vst.msk [vmem:[#allocation0] ss:$8 sm:$0x3] %vm71, %v70
    %s73 = scalar_lea.vmem %s0, 6
    %s74 = smov 3
    %v75 = vld [vmem:[%s73] ss:$16 sm:%s74]
    %76 = vrot.lane.b32.xlu0 %v75, 48
    %v77 = vpop.permute.xlu0 %76
    %vm78 = vcmask 458112
    %79 = vst.msk [vmem:[#allocation0] ss:$8 sm:$0x3] %vm78, %v77
    %s80 = scalar_lea.vmem %s0, 5
    %s81 = smov 3
    %v82 = vld [vmem:[%s80] ss:$16 sm:%s81]
    %83 = vrot.lane.b32.xlu0 %v82, 40
    %v84 = vpop.permute.xlu0 %83
    %vm85 = vcmask 392512
    %86 = vst.msk [vmem:[#allocation0] ss:$8 sm:$0x3] %vm85, %v84
    %s87 = scalar_lea.vmem %s0, 4
    %s88 = smov 3
    %v89 = vld [vmem:[%s87] ss:$16 sm:%s88]
    %90 = vrot.lane.b32.xlu0 %v89, 32
    %v91 = vpop.permute.xlu0 %90
    %vm92 = vcmask 326912
    %93 = vst.msk [vmem:[#allocation0] ss:$8 sm:$0x3] %vm92, %v91
    %s94 = scalar_lea.vmem %s0, 3
    %s95 = smov 3
    %v96 = vld [vmem:[%s94] ss:$16 sm:%s95]
    %97 = vrot.lane.b32.xlu0 %v96, 24
    %v98 = vpop.permute.xlu0 %97
    %vm99 = vcmask 261312
    %100 = vst.msk [vmem:[#allocation0] ss:$8 sm:$0x3] %vm99, %v98
    %s101 = scalar_lea.vmem %s0, 2
    %s102 = smov 3
    %v103 = vld [vmem:[%s101] ss:$16 sm:%s102]
    %104 = vrot.lane.b32.xlu0 %v103, 16
    %v105 = vpop.permute.xlu0 %104
    %vm106 = vcmask 195712
    %107 = vst.msk [vmem:[#allocation0] ss:$8 sm:$0x3] %vm106, %v105
    %s108 = scalar_lea.vmem %s0, 1
    %s109 = smov 3
    %v110 = vld [vmem:[%s108] ss:$16 sm:%s109]
    %111 = vrot.lane.b32.xlu0 %v110, 8
    %v112 = vpop.permute.xlu0 %111
    %vm113 = vcmask 130112
    %114 = vst.msk [vmem:[#allocation0] ss:$8 sm:$0x3] %vm113, %v112
    %s116 = ssub.s32 2, 1
    %v117 = vld [vmem:[#allocation0] sm:%s116]
    %s119 = ssub.s32 2, 1
    %120 = vst [vmem:[%s1] sm:%s119] %v117
    %s121 = scalar_lea.vmem [#allocation0], 8
    %v122 = vld [vmem:[%s121] sm:%s116]
    %s124 = ssub.s32 2, 1
    %s125 = scalar_lea.vmem %s1, 1
    %126 = vst [vmem:[%s125] sm:%s124] %v122
    %s127 = scalar_lea.vmem [#allocation0], 16
    %v128 = vld [vmem:[%s127] sm:%s116]
    %s130 = ssub.s32 2, 1
    %s131 = scalar_lea.vmem %s1, 2
    %132 = vst [vmem:[%s131] sm:%s130] %v128

// kernel: spec_decoder_forward.2
$region0: #{spec_decoder_forward.2}
  #allocation0 [shape = 'u32[]', space=smem, size = 0x4, offset = 0x4, fixed_abs, tag = 'smem constant byte address 0x4 - core index']
  #allocation1 [shape = 'u32[72,128]{1,0:T(1,128)}', space=vmem, size = 0x9000, scoped, tag = 'internal scratch']
  #allocation2 [shape = 'f32[16,264]{1,0:T(8,128)}', space=vmem, size = 0x6000, scoped, tag = 'scratch operand']
  %s0 = inlined_call_operand.vmem [shape: f32[2,16,64], index: 0, kind: input, shape index: {}]
  %s1 = inlined_call_operand.vmem [shape: f32[3,64,264], index: 1, kind: input, shape index: {}]
  %s2 = inlined_call_operand.vmem [shape: f32[1,264], index: 2, kind: input, shape index: {}]
  %s3 = inlined_call_operand.vmem [shape: f32[264,8], index: 3, kind: input, shape index: {}]
  %s4 = inlined_call_operand.vmem [shape: f32[2,16,264], index: 4, kind: output, shape index: {0}]
  %s5 = inlined_call_operand.vmem [shape: f32[2,2,8], index: 5, kind: output, shape index: {1}]
  %6 = xla_tuple %s4, %s5
  %s7 = sld [smem:[#allocation0]]
  $region57: #{spec_decoder_forward.2} parent=0
    _
  %s9 = ssub.s32 1, %s7
  %s10 = scalar_select 0, %s9, %s7
  loop: start=0, step=1, limit=4
  $region2: #{spec_decoder_forward.2} parent=0 // loop_pre_header
    _
  $region3: #{spec_decoder_forward.2} parent=0 // loop_header
    %s12 = sphi 0, %s16
    %p13 = scmp.ge.s32.totalorder %s12, 4
    %s22 = sphi 0, %s24
    %s25 = sphi 0, %s22
    %s26 = sphi 0, %s25
    %s42 = sphi 0, %s26
    %s46 = sphi 0, %s46
    %s48 = sphi 0, %s46
    %s49 = sphi 0, %s48
    %s63 = sphi 0, %s49
    %s67 = sphi 0, %s67
    %s69 = sphi 0, %s67
    %s70 = sphi 0, %s69
    %s84 = sphi 0, %s70
    %s88 = sphi 0, %s88
    %s90 = sphi 0, %s88
    %s91 = sphi 0, %s90
    %s105 = sphi 0, %s91
    %s111 = sphi 0, %s113
    %s114 = sphi 0, %s111
    %s115 = sphi 0, %s114
    %s131 = sphi 0, %s115
    %s137 = sphi 0, %s139
    %s140 = sphi 0, %s137
    %s141 = sphi 0, %s140
    %s157 = sphi 0, %s141
  $region4: #{spec_decoder_forward.2} parent=0 // loop_header_branch
    %15 = sbr.rel (%p13) target = $region8
  $region5: #{spec_decoder_forward.2} parent=0 // loop_body
    %s17 = ssub.s32 %s12, 1
    %s18 = ssub.s32 %s12, 2
    %s19 = sadd.s32 %s12, 1
    %s20 = ssub.s32 %s12, %s19
    %p21 = scmp.eq.s32.totalorder %s20, 0
    %s23 = sadd.s32 %s22, 1
    %s24 = scalar_select %p21, %s22, %s23
    %p27 = pneg %p21
    %p28 = scmp.eq.s32.totalorder %s12, 1
    %p29 = por %p27, %p28
    %p30 = scmp.ne.s32.totalorder %s22, %s25
    %p31 = scmp.eq.s32.totalorder %s12, 0
    %p32 = por %p30, %p31
    %p33 = scmp.ne.s32.totalorder %s22, %s25
    %p34 = scmp.eq.s32.totalorder %s17, 1
    %p35 = por %p33, %p34
    %p36 = scmp.ne.s32.totalorder %s25, %s26
    %p37 = scmp.eq.s32.totalorder %s17, 0
    %p38 = por %p36, %p37
    %p39 = scmp.ne.s32.totalorder %s25, %s26
    %p40 = scmp.eq.s32.totalorder %s18, 1
    %p41 = por %p39, %p40
    %p43 = scmp.ne.s32.totalorder %s26, %s42
    %p44 = scmp.eq.s32.totalorder %s18, 0
    %p45 = por %p43, %p44
    %s47 = sadd.s32 %s46, 1
    %p50 = scmp.eq.s32.totalorder %s12, 1
    %p51 = scmp.ne.s32.totalorder %s46, %s48
    %p52 = scmp.eq.s32.totalorder %s12, 0
    %p53 = por %p51, %p52
    %p54 = scmp.ne.s32.totalorder %s46, %s48
    %p55 = scmp.eq.s32.totalorder %s17, 1
    %p56 = por %p54, %p55
    %p57 = scmp.ne.s32.totalorder %s48, %s49
    %p58 = scmp.eq.s32.totalorder %s17, 0
    %p59 = por %p57, %p58
    %p60 = scmp.ne.s32.totalorder %s48, %s49
    %p61 = scmp.eq.s32.totalorder %s18, 1
    %p62 = por %p60, %p61
    %p64 = scmp.ne.s32.totalorder %s49, %s63
    %p65 = scmp.eq.s32.totalorder %s18, 0
    %p66 = por %p64, %p65
    %s68 = sadd.s32 %s67, 1
    %p71 = scmp.eq.s32.totalorder %s12, 1
    %p72 = scmp.ne.s32.totalorder %s67, %s69
    %p73 = scmp.eq.s32.totalorder %s12, 0
    %p74 = por %p72, %p73
    %p75 = scmp.ne.s32.totalorder %s67, %s69
    %p76 = scmp.eq.s32.totalorder %s17, 1
    %p77 = por %p75, %p76
    %p78 = scmp.ne.s32.totalorder %s69, %s70
    %p79 = scmp.eq.s32.totalorder %s17, 0
    %p80 = por %p78, %p79
    %p81 = scmp.ne.s32.totalorder %s69, %s70
    %p82 = scmp.eq.s32.totalorder %s18, 1
    %p83 = por %p81, %p82
    %p85 = scmp.ne.s32.totalorder %s70, %s84
    %p86 = scmp.eq.s32.totalorder %s18, 0
    %p87 = por %p85, %p86
    %s89 = sadd.s32 %s88, 1
    %p92 = scmp.eq.s32.totalorder %s12, 1
    %p93 = scmp.ne.s32.totalorder %s88, %s90
    %p94 = scmp.eq.s32.totalorder %s12, 0
    %p95 = por %p93, %p94
    %p96 = scmp.ne.s32.totalorder %s88, %s90
    %p97 = scmp.eq.s32.totalorder %s17, 1
    %p98 = por %p96, %p97
    %p99 = scmp.ne.s32.totalorder %s90, %s91
    %p100 = scmp.eq.s32.totalorder %s17, 0
    %p101 = por %p99, %p100
    %p102 = scmp.ne.s32.totalorder %s90, %s91
    %p103 = scmp.eq.s32.totalorder %s18, 1
    %p104 = por %p102, %p103
    %p106 = scmp.ne.s32.totalorder %s91, %s105
    %p107 = scmp.eq.s32.totalorder %s18, 0
    %p108 = por %p106, %p107
    %s109 = ssub.s32 %s12, %s19
    %p110 = scmp.eq.s32.totalorder %s109, 0
    %s112 = sadd.s32 %s111, 1
    %s113 = scalar_select %p110, %s111, %s112
    %p116 = pneg %p110
    %p117 = scmp.eq.s32.totalorder %s12, 1
    %p118 = por %p116, %p117
    %p119 = scmp.ne.s32.totalorder %s111, %s114
    %p120 = scmp.eq.s32.totalorder %s12, 0
    %p121 = por %p119, %p120
    %p122 = scmp.ne.s32.totalorder %s111, %s114
    %p123 = scmp.eq.s32.totalorder %s17, 1
    %p124 = por %p122, %p123
    %p125 = scmp.ne.s32.totalorder %s114, %s115
    %p126 = scmp.eq.s32.totalorder %s17, 0
    %p127 = por %p125, %p126
    %p128 = scmp.ne.s32.totalorder %s114, %s115
    %p129 = scmp.eq.s32.totalorder %s18, 1
    %p130 = por %p128, %p129
    %p132 = scmp.ne.s32.totalorder %s115, %s131
    %p133 = scmp.eq.s32.totalorder %s18, 0
    %p134 = por %p132, %p133
    %s135 = ssub.s32 %s12, %s19
    %p136 = scmp.eq.s32.totalorder %s135, 0
    %s138 = sadd.s32 %s137, 1
    %s139 = scalar_select %p136, %s137, %s138
    %p142 = pneg %p136
    %p143 = scmp.eq.s32.totalorder %s12, 1
    %p144 = por %p142, %p143
    %p145 = scmp.ne.s32.totalorder %s137, %s140
    %p146 = scmp.eq.s32.totalorder %s12, 0
    %p147 = por %p145, %p146
    %p148 = scmp.ne.s32.totalorder %s137, %s140
    %p149 = scmp.eq.s32.totalorder %s17, 1
    %p150 = por %p148, %p149
    %p151 = scmp.ne.s32.totalorder %s140, %s141
    %p152 = scmp.eq.s32.totalorder %s17, 0
    %p153 = por %p151, %p152
    %p154 = scmp.ne.s32.totalorder %s140, %s141
    %p155 = scmp.eq.s32.totalorder %s18, 1
    %p156 = por %p154, %p155
    %p158 = scmp.ne.s32.totalorder %s141, %s157
    %p159 = scmp.eq.s32.totalorder %s18, 0
    %p160 = por %p158, %p159
    %p161 = scmp.le.s32.totalorder 1, %s12
    %p162 = scmp.lt.s32.totalorder %s12, 3
    %p163 = pnand %p161, %p162
    %p164 = pneg %p163
    // Predicated region
    $region9: #{spec_decoder_forward.2} parent=5 // pred_check
      _
    $region10: #{spec_decoder_forward.2} parent=5 // pred_check_branch
      %166 = sbr.rel (%p163) target = $region12
    $region11: #{spec_decoder_forward.2} parent=5 // pred_region
      %s167 = ssub.s32 %s12, 1
      // Predicated region
      $region13: #{spec_decoder_forward.2} parent=11 // pred_check
        %p168 = pneg %p59
      $region14: #{spec_decoder_forward.2} parent=11 // pred_check_branch
        %170 = sbr.rel (%p168) target = $region16
      $region15: #{spec_decoder_forward.2} parent=11 // pred_region
        _
      $region16: #{spec_decoder_forward.2} parent=11 // pred_fallthru
        _
      // Predicated region
      $region17: #{spec_decoder_forward.2} parent=11 // pred_check
        %p171 = pneg %p80
      $region18: #{spec_decoder_forward.2} parent=11 // pred_check_branch
        %173 = sbr.rel (%p171) target = $region20
      $region19: #{spec_decoder_forward.2} parent=11 // pred_region
        _
      $region20: #{spec_decoder_forward.2} parent=11 // pred_fallthru
        _
      // Predicated region
      $region21: #{spec_decoder_forward.2} parent=11 // pred_check
        %p174 = pneg %p101
      $region22: #{spec_decoder_forward.2} parent=11 // pred_check_branch
        %176 = sbr.rel (%p174) target = $region24
      $region23: #{spec_decoder_forward.2} parent=11 // pred_region
        _
      $region24: #{spec_decoder_forward.2} parent=11 // pred_fallthru
        _
    $region12: #{spec_decoder_forward.2} parent=5 // pred_fallthru
      _
    %p177 = scmp.lt.s32.totalorder %s12, 2
    // Predicated region
    $region25: #{spec_decoder_forward.2} parent=5 // pred_check
      %p178 = pneg %p177
    $region26: #{spec_decoder_forward.2} parent=5 // pred_check_branch
      %180 = sbr.rel (%p178) target = $region28
    $region27: #{spec_decoder_forward.2} parent=5 // pred_region
      // Predicated region
      $region29: #{spec_decoder_forward.2} parent=27 // pred_check
        %p181 = pneg %p32
      $region30: #{spec_decoder_forward.2} parent=27 // pred_check_branch
        %183 = sbr.rel (%p181) target = $region32
      $region31: #{spec_decoder_forward.2} parent=27 // pred_region
        %p184 = scmp.lt.s32.totalorder %s12, 1
        %s185 = scalar_select %p184, %s12, 1
        %s186 = smul.addr %s185, 2
        %s187 = smul.addr %s186, 8
        %s188 = scalar_lea.vmem %s0, %s187
      $region32: #{spec_decoder_forward.2} parent=27 // pred_fallthru
        _
    $region28: #{spec_decoder_forward.2} parent=5 // pred_fallthru
      _
    %p189 = scmp.le.s32.totalorder 1, %s12
    %p190 = scmp.lt.s32.totalorder %s12, 3
    %p191 = pnand %p189, %p190
    %p192 = pneg %p191
    // Predicated region
    $region33: #{spec_decoder_forward.2} parent=5 // pred_check
      _
    $region34: #{spec_decoder_forward.2} parent=5 // pred_check_branch
      %194 = sbr.rel (%p191) target = $region36
    $region35: #{spec_decoder_forward.2} parent=5 // pred_region
      %s195 = ssub.s32 %s12, 1
      %p196 = scmp.lt.s32.totalorder %s17, 1
      %s197 = scalar_select %p196, %s17, 1
      %s198 = smul.addr %s197, 2
      %s199 = smul.addr %s198, 8
      %s200 = scalar_lea.vmem %s0, %s199
      %p201 = pneg %p38
      %p202 = pneg %p35
      %p203 = pneg %p59
      %p204 = pneg %p56
      %p205 = pneg %p80
      %p206 = pneg %p77
      %p207 = pneg %p101
      %p208 = pneg %p98
      %p209 = pneg %p127
      %p210 = pneg %p124
      %p211 = scmp.lt.s32.totalorder %s17, 1
      %s212 = scalar_select %p211, %s17, 1
      %s213 = smul.addr %s212, 6
      %s214 = smul.addr %s213, 8
      %s215 = scalar_lea.vmem %s4, %s214
      %p216 = pneg %p153
      %p217 = pneg %p150
      %p218 = scmp.lt.s32.totalorder %s17, 1
      %s219 = scalar_select %p218, %s17, 1
      %s220 = smul.addr %s219, 2
      %s221 = scalar_lea.vmem %s5, %s220
      %p222 = scmp.lt.s32.totalorder %s17, 1
      %s223 = scalar_select %p222, %s17, 1
      %s224 = smul.addr %s223, 2
      %s225 = smul.addr %s224, 8
      %s226 = scalar_lea.vmem %s0, %s225
      %p227 = scmp.lt.s32.totalorder %s17, 1
      %s228 = scalar_select %p227, %s17, 1
      %s229 = smul.addr %s228, 6
      %s230 = smul.addr %s229, 8
      %s231 = scalar_lea.vmem %s4, %s230
      %p232 = scmp.lt.s32.totalorder %s17, 1
      %s233 = scalar_select %p232, %s17, 1
      %s234 = smul.addr %s233, 2
      %s235 = scalar_lea.vmem %s5, %s234
      %v236 = vld [vmem:[%s226] sm:$0xff]
      %v237 = vld [vmem:[%s226 + $0x8] sm:$0xff]
      %s238 = scalar_lea.vmem %s1, 192
      %v239 = vld [vmem:[%s238] sm:$0xff]
      %v240 = vld [vmem:[%s238 + $0x8] sm:$0xff]
      %v241 = vld [vmem:[%s238 + $0x10] sm:$0xff]
      %v242 = vld [vmem:[%s238 + $0x18] sm:$0xff]
      %v243 = vld [vmem:[%s238 + $0x20] sm:$0xff]
      %v244 = vld [vmem:[%s238 + $0x28] sm:$0xff]
      %v245 = vld [vmem:[%s238 + $0x30] sm:$0xff]
      %v246 = vld [vmem:[%s238 + $0x38] sm:$0xff]
      %v247 = vld [vmem:[%s238 + $0x40] sm:$0xff]
      %v248 = vld [vmem:[%s238 + $0x48] sm:$0xff]
      %v249 = vld [vmem:[%s238 + $0x50] sm:$0xff]
      %v250 = vld [vmem:[%s238 + $0x58] sm:$0xff]
      %v251 = vld [vmem:[%s238 + $0x60] sm:$0xff]
      %v252 = vld [vmem:[%s238 + $0x68] sm:$0xff]
      %v253 = vld [vmem:[%s238 + $0x70] sm:$0xff]
      %v254 = vld [vmem:[%s238 + $0x78] sm:$0xff]
      %v255 = vld [vmem:[%s238 + $0x80] sm:$0xff]
      %v256 = vld [vmem:[%s238 + $0x88] sm:$0xff]
      %v257 = vld [vmem:[%s238 + $0x90] sm:$0xff]
      %v258 = vld [vmem:[%s238 + $0x98] sm:$0xff]
      %v259 = vld [vmem:[%s238 + $0xa0] sm:$0xff]
      %v260 = vld [vmem:[%s238 + $0xa8] sm:$0xff]
      %v261 = vld [vmem:[%s238 + $0xb0] sm:$0xff]
      %v262 = vld [vmem:[%s238 + $0xb8] sm:$0xff]
      %vm263 = vcmask 523264
      %v265 = vsel %vm263, %v236, 0
      %v268 = vsel %vm263, %v237, 0
      %270 = vmatpush.msra.mxu0 0.0
      %271 = vmatpush.msra.mxu0 0.0
      %272 = vmatpush.msra.mxu0 0.0
      %273 = vmatpush.msra.mxu0 0.0
      %274 = vmatpush.msra.mxu0 0.0
      %275 = vmatpush.msra.mxu0 0.0
      %276 = vmatpush.msra.mxu0 0.0
      %277 = vmatpush.msra.mxu0 0.0
      %278 = vmatpush.msra.mxu0 %v260
      %279 = vmatpush.msra.mxu0 %v257
      %280 = vmatpush.msra.mxu0 %v254
      %281 = vmatpush.msra.mxu0 %v251
      %282 = vmatpush.msra.mxu0 %v248
      %283 = vmatpush.msra.mxu0 %v245
      %284 = vmatpush.msra.mxu0 %v242
      %285 = vmatpush.msra.mxu0 %v239
      %286 = vmatmul.f32.gmra.mxu0 %v265
      %v287 = vpop.f32.mrf.mxu0
      %v288 = vadd.f32 0.0, %v287
      %289 = vmatmul.f32.gmra.mxu0 %v268
      %v290 = vpop.f32.mrf.mxu0
      %v291 = vadd.f32 0.0, %v290
      %292 = vdwg.mxu0
      %293 = vmatpush.msra.mxu0 0.0
      %294 = vmatpush.msra.mxu0 0.0
      %295 = vmatpush.msra.mxu0 0.0
      %296 = vmatpush.msra.mxu0 0.0
      %297 = vmatpush.msra.mxu0 0.0
      %298 = vmatpush.msra.mxu0 0.0
      %299 = vmatpush.msra.mxu0 0.0
      %300 = vmatpush.msra.mxu0 0.0
      %301 = vmatpush.msra.mxu0 %v261
      %302 = vmatpush.msra.mxu0 %v258
      %303 = vmatpush.msra.mxu0 %v255
      %304 = vmatpush.msra.mxu0 %v252
      %305 = vmatpush.msra.mxu0 %v249
      %306 = vmatpush.msra.mxu0 %v246
      %307 = vmatpush.msra.mxu0 %v243
      %308 = vmatpush.msra.mxu0 %v240
      %309 = vmatmul.f32.gmra.mxu0 %v265
      %v310 = vpop.f32.mrf.mxu0
      %v311 = vadd.f32 0.0, %v310
      %312 = vmatmul.f32.gmra.mxu0 %v268
      %v313 = vpop.f32.mrf.mxu0
      %v314 = vadd.f32 0.0, %v313
      %315 = vdwg.mxu0
      %316 = vmatpush.msra.mxu0 0.0
      %317 = vmatpush.msra.mxu0 0.0
      %318 = vmatpush.msra.mxu0 0.0
      %319 = vmatpush.msra.mxu0 0.0
      %320 = vmatpush.msra.mxu0 0.0
      %321 = vmatpush.msra.mxu0 0.0
      %322 = vmatpush.msra.mxu0 0.0
      %323 = vmatpush.msra.mxu0 0.0
      %324 = vmatpush.msra.mxu0 %v262
      %325 = vmatpush.msra.mxu0 %v259
      %326 = vmatpush.msra.mxu0 %v256
      %327 = vmatpush.msra.mxu0 %v253
      %328 = vmatpush.msra.mxu0 %v250
      %329 = vmatpush.msra.mxu0 %v247
      %330 = vmatpush.msra.mxu0 %v244
      %331 = vmatpush.msra.mxu0 %v241
      %332 = vmatmul.f32.gmra.mxu0 %v265
      %v333 = vpop.f32.mrf.mxu0
      %v334 = vadd.f32 0.0, %v333
      %335 = vmatmul.f32.gmra.mxu0 %v268
      %v336 = vpop.f32.mrf.mxu0
      %v337 = vadd.f32 0.0, %v336
      %338 = vdwg.mxu0
      %339 = vst [vmem:[#allocation2] sm:$0xff] %v288
      %340 = vst [vmem:[#allocation2 + $0x8] sm:$0xff] %v311
      %vm341 = vcmask 64512
      %342 = vst.msk [vmem:[#allocation2 + $0x10] sm:$0xff] %vm341, %v334
      %343 = vst [vmem:[#allocation2 + $0x18] sm:$0xff] %v291
      %344 = vst [vmem:[#allocation2 + $0x20] sm:$0xff] %v314
      %345 = vst.msk [vmem:[#allocation2 + $0x28] sm:$0xff] %vm341, %v337
      %v346 = vld [vmem:[#allocation2] sm:$0xff]
      %v347 = vld [vmem:[#allocation2 + $0x8] sm:$0xff]
      %v348 = vld [vmem:[#allocation2 + $0x10] sm:$0xff]
      %v349 = vld [vmem:[#allocation2 + $0x18] sm:$0x7f]
      %v350 = vld [vmem:[#allocation2 + $0x20] sm:$0x7f]
      %v351 = vld [vmem:[#allocation2 + $0x28] sm:$0x7f]
      %v352 = vld [vmem:[%s1] sm:$0xff]
      %v353 = vld [vmem:[%s1 + $0x8] sm:$0xff]
      %v354 = vld [vmem:[%s1 + $0x10] sm:$0xff]
      %v355 = vld [vmem:[%s1 + $0x18] sm:$0xff]
      %v356 = vld [vmem:[%s1 + $0x20] sm:$0xff]
      %v357 = vld [vmem:[%s1 + $0x28] sm:$0xff]
      %v358 = vld [vmem:[%s1 + $0x30] sm:$0xff]
      %v359 = vld [vmem:[%s1 + $0x38] sm:$0xff]
      %v360 = vld [vmem:[%s1 + $0x40] sm:$0xff]
      %v361 = vld [vmem:[%s1 + $0x48] sm:$0xff]
      %v362 = vld [vmem:[%s1 + $0x50] sm:$0xff]
      %v363 = vld [vmem:[%s1 + $0x58] sm:$0xff]
      %v364 = vld [vmem:[%s1 + $0x60] sm:$0xff]
      %v365 = vld [vmem:[%s1 + $0x68] sm:$0xff]
      %v366 = vld [vmem:[%s1 + $0x70] sm:$0xff]
      %v367 = vld [vmem:[%s1 + $0x78] sm:$0xff]
      %v368 = vld [vmem:[%s1 + $0x80] sm:$0xff]
      %v369 = vld [vmem:[%s1 + $0x88] sm:$0xff]
      %v370 = vld [vmem:[%s1 + $0x90] sm:$0xff]
      %v371 = vld [vmem:[%s1 + $0x98] sm:$0xff]
      %v372 = vld [vmem:[%s1 + $0xa0] sm:$0xff]
      %v373 = vld [vmem:[%s1 + $0xa8] sm:$0xff]
      %v374 = vld [vmem:[%s1 + $0xb0] sm:$0xff]
      %v375 = vld [vmem:[%s1 + $0xb8] sm:$0xff]
      %vm376 = vcmask 1046528
      %v377 = vrot.slane %v236, 1
      %v378 = vrot.slane %v237, 1
      %v379 = vsel %vm376, %v377, %v378
      %v380 = vsel %vm263, %v379, 0
      %v382 = vsel %vm263, %v378, 0
      %384 = vmatpush.msra.mxu0 0.0
      %385 = vmatpush.msra.mxu0 0.0
      %386 = vmatpush.msra.mxu0 0.0
      %387 = vmatpush.msra.mxu0 0.0
      %388 = vmatpush.msra.mxu0 0.0
      %389 = vmatpush.msra.mxu0 0.0
      %390 = vmatpush.msra.mxu0 0.0
      %391 = vmatpush.msra.mxu0 0.0
      %392 = vmatpush.msra.mxu0 %v373
      %393 = vmatpush.msra.mxu0 %v370
      %394 = vmatpush.msra.mxu0 %v367
      %395 = vmatpush.msra.mxu0 %v364
      %396 = vmatpush.msra.mxu0 %v361
      %397 = vmatpush.msra.mxu0 %v358
      %398 = vmatpush.msra.mxu0 %v355
      %399 = vmatpush.msra.mxu0 %v352
      %400 = vmatmul.f32.gmra.mxu0 %v380
      %v401 = vpop.f32.mrf.mxu0
      %v402 = vadd.f32 0.0, %v401
      %403 = vmatmul.f32.gmra.mxu0 %v382
      %v404 = vpop.f32.mrf.mxu0
      %v405 = vadd.f32 0.0, %v404
      %406 = vdwg.mxu0
      %407 = vmatpush.msra.mxu0 0.0
      %408 = vmatpush.msra.mxu0 0.0
      %409 = vmatpush.msra.mxu0 0.0
      %410 = vmatpush.msra.mxu0 0.0
      %411 = vmatpush.msra.mxu0 0.0
      %412 = vmatpush.msra.mxu0 0.0
      %413 = vmatpush.msra.mxu0 0.0
      %414 = vmatpush.msra.mxu0 0.0
      %415 = vmatpush.msra.mxu0 %v374
      %416 = vmatpush.msra.mxu0 %v371
      %417 = vmatpush.msra.mxu0 %v368
      %418 = vmatpush.msra.mxu0 %v365
      %419 = vmatpush.msra.mxu0 %v362
      %420 = vmatpush.msra.mxu0 %v359
      %421 = vmatpush.msra.mxu0 %v356
      %422 = vmatpush.msra.mxu0 %v353
      %423 = vmatmul.f32.gmra.mxu0 %v380
      %v424 = vpop.f32.mrf.mxu0
      %v425 = vadd.f32 0.0, %v424
      %426 = vmatmul.f32.gmra.mxu0 %v382
      %v427 = vpop.f32.mrf.mxu0
      %v428 = vadd.f32 0.0, %v427
      %429 = vdwg.mxu0
      %430 = vmatpush.msra.mxu0 0.0
      %431 = vmatpush.msra.mxu0 0.0
      %432 = vmatpush.msra.mxu0 0.0
      %433 = vmatpush.msra.mxu0 0.0
      %434 = vmatpush.msra.mxu0 0.0
      %435 = vmatpush.msra.mxu0 0.0
      %436 = vmatpush.msra.mxu0 0.0
      %437 = vmatpush.msra.mxu0 0.0
      %438 = vmatpush.msra.mxu0 %v375
      %439 = vmatpush.msra.mxu0 %v372
      %440 = vmatpush.msra.mxu0 %v369
      %441 = vmatpush.msra.mxu0 %v366
      %442 = vmatpush.msra.mxu0 %v363
      %443 = vmatpush.msra.mxu0 %v360
      %444 = vmatpush.msra.mxu0 %v357
      %445 = vmatpush.msra.mxu0 %v354
      %446 = vmatmul.f32.gmra.mxu0 %v380
      %v447 = vpop.f32.mrf.mxu0
      %v448 = vadd.f32 0.0, %v447
      %449 = vmatmul.f32.gmra.mxu0 %v382
      %v450 = vpop.f32.mrf.mxu0
      %v451 = vadd.f32 0.0, %v450
      %452 = vdwg.mxu0
      %v453 = vadd.f32 %v346, %v402
      %v454 = vadd.f32 %v347, %v425
      %v455 = vadd.f32 %v348, %v448
      %v456 = vadd.f32 %v349, %v405
      %v457 = vadd.f32 %v350, %v428
      %v458 = vadd.f32 %v351, %v451
      %459 = vst [vmem:[#allocation2] sm:$0xff] %v453
      %460 = vst [vmem:[#allocation2 + $0x8] sm:$0xff] %v454
      %461 = vst.msk [vmem:[#allocation2 + $0x10] sm:$0xff] %vm341, %v455
      %462 = vst [vmem:[#allocation2 + $0x18] sm:$0x7f] %v456
      %463 = vst [vmem:[#allocation2 + $0x20] sm:$0x7f] %v457
      %vm464 = vcmask 63488
      %465 = vst.msk [vmem:[#allocation2 + $0x28] sm:$0x7f] %vm464, %v458
      %v466 = vld [vmem:[#allocation2] sm:$0xfe]
      %v467 = vld [vmem:[#allocation2 + $0x8] sm:$0xfe]
      %v468 = vld [vmem:[#allocation2 + $0x10] sm:$0xfe]
      %v469 = vld [vmem:[#allocation2 + $0x18] sm:$0xff]
      %v470 = vld [vmem:[#allocation2 + $0x20] sm:$0xff]
      %v471 = vld [vmem:[#allocation2 + $0x28] sm:$0xff]
      %s472 = scalar_lea.vmem %s1, 384
      %v473 = vld [vmem:[%s472] sm:$0xff]
      %v474 = vld [vmem:[%s472 + $0x8] sm:$0xff]
      %v475 = vld [vmem:[%s472 + $0x10] sm:$0xff]
      %v476 = vld [vmem:[%s472 + $0x18] sm:$0xff]
      %v477 = vld [vmem:[%s472 + $0x20] sm:$0xff]
      %v478 = vld [vmem:[%s472 + $0x28] sm:$0xff]
      %v479 = vld [vmem:[%s472 + $0x30] sm:$0xff]
      %v480 = vld [vmem:[%s472 + $0x38] sm:$0xff]
      %v481 = vld [vmem:[%s472 + $0x40] sm:$0xff]
      %v482 = vld [vmem:[%s472 + $0x48] sm:$0xff]
      %v483 = vld [vmem:[%s472 + $0x50] sm:$0xff]
      %v484 = vld [vmem:[%s472 + $0x58] sm:$0xff]
      %v485 = vld [vmem:[%s472 + $0x60] sm:$0xff]
      %v486 = vld [vmem:[%s472 + $0x68] sm:$0xff]
      %v487 = vld [vmem:[%s472 + $0x70] sm:$0xff]
      %v488 = vld [vmem:[%s472 + $0x78] sm:$0xff]
      %v489 = vld [vmem:[%s472 + $0x80] sm:$0xff]
      %v490 = vld [vmem:[%s472 + $0x88] sm:$0xff]
      %v491 = vld [vmem:[%s472 + $0x90] sm:$0xff]
      %v492 = vld [vmem:[%s472 + $0x98] sm:$0xff]
      %v493 = vld [vmem:[%s472 + $0xa0] sm:$0xff]
      %v494 = vld [vmem:[%s472 + $0xa8] sm:$0xff]
      %v495 = vld [vmem:[%s472 + $0xb0] sm:$0xff]
      %v496 = vld [vmem:[%s472 + $0xb8] sm:$0xff]
      %497 = vmatpush.msra.mxu0 0.0
      %498 = vmatpush.msra.mxu0 0.0
      %499 = vmatpush.msra.mxu0 0.0
      %500 = vmatpush.msra.mxu0 0.0
      %501 = vmatpush.msra.mxu0 0.0
      %502 = vmatpush.msra.mxu0 0.0
      %503 = vmatpush.msra.mxu0 0.0
      %504 = vmatpush.msra.mxu0 0.0
      %505 = vmatpush.msra.mxu0 %v494
      %506 = vmatpush.msra.mxu0 %v491
      %507 = vmatpush.msra.mxu0 %v488
      %508 = vmatpush.msra.mxu0 %v485
      %509 = vmatpush.msra.mxu0 %v482
      %510 = vmatpush.msra.mxu0 %v479
      %511 = vmatpush.msra.mxu0 %v476
      %512 = vmatpush.msra.mxu0 %v473
      %513 = vmatmul.f32.gmra.mxu0 %v265
      %v514 = vpop.f32.mrf.mxu0
      %v515 = vadd.f32 0.0, %v514
      %516 = vmatmul.f32.gmra.mxu0 %v268
      %v517 = vpop.f32.mrf.mxu0
      %v518 = vadd.f32 0.0, %v517
      %519 = vdwg.mxu0
      %520 = vmatpush.msra.mxu0 0.0
      %521 = vmatpush.msra.mxu0 0.0
      %522 = vmatpush.msra.mxu0 0.0
      %523 = vmatpush.msra.mxu0 0.0
      %524 = vmatpush.msra.mxu0 0.0
      %525 = vmatpush.msra.mxu0 0.0
      %526 = vmatpush.msra.mxu0 0.0
      %527 = vmatpush.msra.mxu0 0.0
      %528 = vmatpush.msra.mxu0 %v495
      %529 = vmatpush.msra.mxu0 %v492
      %530 = vmatpush.msra.mxu0 %v489
      %531 = vmatpush.msra.mxu0 %v486
      %532 = vmatpush.msra.mxu0 %v483
      %533 = vmatpush.msra.mxu0 %v480
      %534 = vmatpush.msra.mxu0 %v477
      %535 = vmatpush.msra.mxu0 %v474
      %536 = vmatmul.f32.gmra.mxu0 %v265
      %v537 = vpop.f32.mrf.mxu0
      %v538 = vadd.f32 0.0, %v537
      %539 = vmatmul.f32.gmra.mxu0 %v268
      %v540 = vpop.f32.mrf.mxu0
      %v541 = vadd.f32 0.0, %v540
      %542 = vdwg.mxu0
      %543 = vmatpush.msra.mxu0 0.0
      %544 = vmatpush.msra.mxu0 0.0
      %545 = vmatpush.msra.mxu0 0.0
      %546 = vmatpush.msra.mxu0 0.0
      %547 = vmatpush.msra.mxu0 0.0
      %548 = vmatpush.msra.mxu0 0.0
      %549 = vmatpush.msra.mxu0 0.0
      %550 = vmatpush.msra.mxu0 0.0
      %551 = vmatpush.msra.mxu0 %v496
      %552 = vmatpush.msra.mxu0 %v493
      %553 = vmatpush.msra.mxu0 %v490
      %554 = vmatpush.msra.mxu0 %v487
      %555 = vmatpush.msra.mxu0 %v484
      %556 = vmatpush.msra.mxu0 %v481
      %557 = vmatpush.msra.mxu0 %v478
      %558 = vmatpush.msra.mxu0 %v475
      %559 = vmatmul.f32.gmra.mxu0 %v265
      %v560 = vpop.f32.mrf.mxu0
      %v561 = vadd.f32 0.0, %v560
      %562 = vmatmul.f32.gmra.mxu0 %v268
      %v563 = vpop.f32.mrf.mxu0
      %v564 = vadd.f32 0.0, %v563
      %565 = vdwg.mxu0
      %vm572 = vcmask 1040384
      %v573 = vrot.slane %v515, 7
      %v574 = vrot.slane %v538, 7
      %v575 = vrot.slane %v561, 7
      %v576 = vrot.slane %v518, 7
      %v577 = vsel %vm572, %v573, %v576
      %v578 = vrot.slane %v541, 7
      %v579 = vsel %vm572, %v574, %v578
      %v580 = vrot.slane %v564, 7
      %v581 = vsel %vm572, %v575, %v580
      %v588 = vadd.f32 %v466, %v573
      %v589 = vadd.f32 %v467, %v574
      %v590 = vadd.f32 %v468, %v575
      %v591 = vadd.f32 %v469, %v577
      %v592 = vadd.f32 %v470, %v579
      %v593 = vadd.f32 %v471, %v581
      %594 = vst [vmem:[#allocation2] sm:$0xfe] %v588
      %595 = vst [vmem:[#allocation2 + $0x8] sm:$0xfe] %v589
      %vm596 = vcmask 64513
      %597 = vst.msk [vmem:[#allocation2 + $0x10] sm:$0xfe] %vm596, %v590
      %598 = vst [vmem:[#allocation2 + $0x18] sm:$0xff] %v591
      %599 = vst [vmem:[#allocation2 + $0x20] sm:$0xff] %v592
      %600 = vst.msk [vmem:[#allocation2 + $0x28] sm:$0xff] %vm341, %v593
      %v601 = vld [vmem:[#allocation2] sm:$0xff]
      %v602 = vld [vmem:[#allocation2 + $0x8] sm:$0xff]
      %v603 = vld [vmem:[#allocation2 + $0x10] sm:$0xff]
      %v604 = vld [vmem:[#allocation2 + $0x18] sm:$0xff]
      %v605 = vld [vmem:[#allocation2 + $0x20] sm:$0xff]
      %v606 = vld [vmem:[#allocation2 + $0x28] sm:$0xff]
      %v607 = vld [vmem:[%s2] sm:$0x7]
      %v609 = vperm.slane %v607, 0
      %v610 = vperm.slane %v607, 1
      %v611 = vperm.slane %v607, 2
      %v615 = vadd.f32 %v601, %v609
      %v616 = vadd.f32 %v602, %v610
      %v617 = vadd.f32 %v603, %v611
      %v618 = vadd.f32 %v604, %v609
      %v619 = vadd.f32 %v605, %v610
      %v620 = vadd.f32 %v606, %v611
      %621 = vst [vmem:[%s231] sm:$0xff] %v615
      %622 = vst [vmem:[%s231 + $0x8] sm:$0xff] %v616
      %623 = vst.msk [vmem:[%s231 + $0x10] sm:$0xff] %vm341, %v617
      %624 = vst [vmem:[%s231 + $0x18] sm:$0xff] %v618
      %625 = vst [vmem:[%s231 + $0x20] sm:$0xff] %v619
      %626 = vst.msk [vmem:[%s231 + $0x28] sm:$0xff] %vm341, %v620
      %v627 = vadd.f32 %v615, %v618
      %v628 = vrot.slane %v627, 4
      %v629 = vadd.f32 %v627, %v628
      %v630 = vrot.slane %v629, 2
      %v631 = vadd.f32 %v629, %v630
      %v632 = vrot.slane %v631, 1
      %v633 = vadd.f32 %v631, %v632
      %v634 = vadd.f32 %v616, %v619
      %v635 = vrot.slane %v634, 4
      %v636 = vadd.f32 %v634, %v635
      %v637 = vrot.slane %v636, 2
      %v638 = vadd.f32 %v636, %v637
      %v639 = vrot.slane %v638, 1
      %v640 = vadd.f32 %v638, %v639
      %v641 = vsel %vm341, %v617, 0.0
      %v642 = vsel %vm341, %v620, 0.0
      %v643 = vadd.f32 %v641, %v642
      %v644 = vrot.slane %v643, 4
      %v645 = vadd.f32 %v643, %v644
      %v646 = vrot.slane %v645, 2
      %v647 = vadd.f32 %v645, %v646
      %v648 = vrot.slane %v647, 1
      %v649 = vadd.f32 %v647, %v648
      %v650 = vmul.f32 %v615, %v615
      %v651 = vmul.f32 %v616, %v616
      %v652 = vmul.f32 %v617, %v617
      %v653 = vmul.f32 %v618, %v618
      %v654 = vmul.f32 %v619, %v619
      %v655 = vmul.f32 %v620, %v620
      %v656 = vadd.f32 %v650, %v653
      %v657 = vrot.slane %v656, 4
      %v658 = vadd.f32 %v656, %v657
      %v659 = vrot.slane %v658, 2
      %v660 = vadd.f32 %v658, %v659
      %v661 = vrot.slane %v660, 1
      %v662 = vadd.f32 %v660, %v661
      %v663 = vadd.f32 %v651, %v654
      %v664 = vrot.slane %v663, 4
      %v665 = vadd.f32 %v663, %v664
      %v666 = vrot.slane %v665, 2
      %v667 = vadd.f32 %v665, %v666
      %v668 = vrot.slane %v667, 1
      %v669 = vadd.f32 %v667, %v668
      %v670 = vsel %vm341, %v652, 0.0
      %v671 = vsel %vm341, %v655, 0.0
      %v672 = vadd.f32 %v670, %v671
      %v673 = vrot.slane %v672, 4
      %v674 = vadd.f32 %v672, %v673
      %v675 = vrot.slane %v674, 2
      %v676 = vadd.f32 %v674, %v675
      %v677 = vrot.slane %v676, 1
      %v678 = vadd.f32 %v676, %v677
      %v679 = vld [vmem:[%s3] sm:$0xff]
      %v680 = vld [vmem:[%s3 + $0x8] sm:$0xff]
      %v681 = vld [vmem:[%s3 + $0x10] sm:$0xff]
      %v682 = vld [vmem:[%s3 + $0x18] sm:$0xff]
      %v683 = vld [vmem:[%s3 + $0x20] sm:$0xff]
      %v684 = vld [vmem:[%s3 + $0x28] sm:$0xff]
      %v685 = vld [vmem:[%s3 + $0x30] sm:$0xff]
      %v686 = vld [vmem:[%s3 + $0x38] sm:$0xff]
      %v687 = vld [vmem:[%s3 + $0x40] sm:$0xff]
      %v688 = vld [vmem:[%s3 + $0x48] sm:$0xff]
      %v689 = vld [vmem:[%s3 + $0x50] sm:$0xff]
      %v690 = vld [vmem:[%s3 + $0x58] sm:$0xff]
      %v691 = vld [vmem:[%s3 + $0x60] sm:$0xff]
      %v692 = vld [vmem:[%s3 + $0x68] sm:$0xff]
      %v693 = vld [vmem:[%s3 + $0x70] sm:$0xff]
      %v694 = vld [vmem:[%s3 + $0x78] sm:$0xff]
      %v695 = vld [vmem:[%s3 + $0x80] sm:$0xff]
      %v696 = vld [vmem:[%s3 + $0x88] sm:$0xff]
      %v697 = vld [vmem:[%s3 + $0x90] sm:$0xff]
      %v698 = vld [vmem:[%s3 + $0x98] sm:$0xff]
      %v699 = vld [vmem:[%s3 + $0xa0] sm:$0xff]
      %v700 = vld [vmem:[%s3 + $0xa8] sm:$0xff]
      %v701 = vld [vmem:[%s3 + $0xb0] sm:$0xff]
      %v702 = vld [vmem:[%s3 + $0xb8] sm:$0xff]
      %v703 = vld [vmem:[%s3 + $0xc0] sm:$0xff]
      %v704 = vld [vmem:[%s3 + $0xc8] sm:$0xff]
      %v705 = vld [vmem:[%s3 + $0xd0] sm:$0xff]
      %v706 = vld [vmem:[%s3 + $0xd8] sm:$0xff]
      %v707 = vld [vmem:[%s3 + $0xe0] sm:$0xff]
      %v708 = vld [vmem:[%s3 + $0xe8] sm:$0xff]
      %v709 = vld [vmem:[%s3 + $0xf0] sm:$0xff]
      %v710 = vld [vmem:[%s3 + $0xf8] sm:$0xff]
      %v711 = vld [vmem:[%s3 + $0x100] sm:$0xff]
      %v713 = vsel %vm341, %v649, 0
      %v715 = vand.u32 %v694, 4294901760
      %716 = vmatpush.msra.mxu0 %v715
      %v717 = vand.u32 %v693, 4294901760
      %718 = vmatpush.msra.mxu0 %v717
      %v719 = vand.u32 %v692, 4294901760
      %720 = vmatpush.msra.mxu0 %v719
      %v721 = vand.u32 %v691, 4294901760
      %722 = vmatpush.msra.mxu0 %v721
      %v723 = vand.u32 %v690, 4294901760
      %724 = vmatpush.msra.mxu0 %v723
      %v725 = vand.u32 %v689, 4294901760
      %726 = vmatpush.msra.mxu0 %v725
      %v727 = vand.u32 %v688, 4294901760
      %728 = vmatpush.msra.mxu0 %v727
      %v729 = vand.u32 %v687, 4294901760
      %730 = vmatpush.msra.mxu0 %v729
      %v731 = vand.u32 %v686, 4294901760
      %732 = vmatpush.msra.mxu0 %v731
      %v733 = vand.u32 %v685, 4294901760
      %734 = vmatpush.msra.mxu0 %v733
      %v735 = vand.u32 %v684, 4294901760
      %736 = vmatpush.msra.mxu0 %v735
      %v737 = vand.u32 %v683, 4294901760
      %738 = vmatpush.msra.mxu0 %v737
      %v739 = vand.u32 %v682, 4294901760
      %740 = vmatpush.msra.mxu0 %v739
      %v741 = vand.u32 %v681, 4294901760
      %742 = vmatpush.msra.mxu0 %v741
      %v743 = vand.u32 %v680, 4294901760
      %744 = vmatpush.msra.mxu0 %v743
      %v745 = vand.u32 %v679, 4294901760
      %746 = vmatpush.msra.mxu0 %v745
      %v747 = vand.u32 %v633, 4294901760
      %v748 = vsub.f32 %v633, %v747
      %v749 = vand.u32 %v748, 4294901760
      %v750 = vsub.f32 %v748, %v749
      %v751 = vand.u32 %v750, 4294901760
      %752 = vmatmul.f32.gmra.mxu0 %v751
      %v753 = vpop.f32.mrf.mxu0
      %v754 = vadd.f32 0.0, %v753
      %755 = vdwg.mxu0
      %v756 = vand.u32 %v694, 4294901760
      %v757 = vsub.f32 %v694, %v756
      %v758 = vand.u32 %v757, 4294901760
      %v759 = vsub.f32 %v757, %v758
      %v760 = vand.u32 %v759, 4294901760
      %761 = vmatpush.msra.mxu0 %v760
      %v762 = vand.u32 %v693, 4294901760
      %v763 = vsub.f32 %v693, %v762
      %v764 = vand.u32 %v763, 4294901760
      %v765 = vsub.f32 %v763, %v764
      %v766 = vand.u32 %v765, 4294901760
      %767 = vmatpush.msra.mxu0 %v766
      %v768 = vand.u32 %v692, 4294901760
      %v769 = vsub.f32 %v692, %v768
      %v770 = vand.u32 %v769, 4294901760
      %v771 = vsub.f32 %v769, %v770
      %v772 = vand.u32 %v771, 4294901760
      %773 = vmatpush.msra.mxu0 %v772
      %v774 = vand.u32 %v691, 4294901760
      %v775 = vsub.f32 %v691, %v774
      %v776 = vand.u32 %v775, 4294901760
      %v777 = vsub.f32 %v775, %v776
      %v778 = vand.u32 %v777, 4294901760
      %779 = vmatpush.msra.mxu0 %v778
      %v780 = vand.u32 %v690, 4294901760
      %v781 = vsub.f32 %v690, %v780
      %v782 = vand.u32 %v781, 4294901760
      %v783 = vsub.f32 %v781, %v782
      %v784 = vand.u32 %v783, 4294901760
      %785 = vmatpush.msra.mxu0 %v784
      %v786 = vand.u32 %v689, 4294901760
      %v787 = vsub.f32 %v689, %v786
      %v788 = vand.u32 %v787, 4294901760
      %v789 = vsub.f32 %v787, %v788
      %v790 = vand.u32 %v789, 4294901760
      %791 = vmatpush.msra.mxu0 %v790
      %v792 = vand.u32 %v688, 4294901760
      %v793 = vsub.f32 %v688, %v792
      %v794 = vand.u32 %v793, 4294901760
      %v795 = vsub.f32 %v793, %v794
      %v796 = vand.u32 %v795, 4294901760
      %797 = vmatpush.msra.mxu0 %v796
      %v798 = vand.u32 %v687, 4294901760
      %v799 = vsub.f32 %v687, %v798
      %v800 = vand.u32 %v799, 4294901760
      %v801 = vsub.f32 %v799, %v800
      %v802 = vand.u32 %v801, 4294901760
      %803 = vmatpush.msra.mxu0 %v802
      %v804 = vand.u32 %v686, 4294901760
      %v805 = vsub.f32 %v686, %v804
      %v806 = vand.u32 %v805, 4294901760
      %v807 = vsub.f32 %v805, %v806
      %v808 = vand.u32 %v807, 4294901760
      %809 = vmatpush.msra.mxu0 %v808
      %v810 = vand.u32 %v685, 4294901760
      %v811 = vsub.f32 %v685, %v810
      %v812 = vand.u32 %v811, 4294901760
      %v813 = vsub.f32 %v811, %v812
      %v814 = vand.u32 %v813, 4294901760
      %815 = vmatpush.msra.mxu0 %v814
      %v816 = vand.u32 %v684, 4294901760
      %v817 = vsub.f32 %v684, %v816
      %v818 = vand.u32 %v817, 4294901760
      %v819 = vsub.f32 %v817, %v818
      %v820 = vand.u32 %v819, 4294901760
      %821 = vmatpush.msra.mxu0 %v820
      %v822 = vand.u32 %v683, 4294901760
      %v823 = vsub.f32 %v683, %v822
      %v824 = vand.u32 %v823, 4294901760
      %v825 = vsub.f32 %v823, %v824
      %v826 = vand.u32 %v825, 4294901760
      %827 = vmatpush.msra.mxu0 %v826
      %v828 = vand.u32 %v682, 4294901760
      %v829 = vsub.f32 %v682, %v828
      %v830 = vand.u32 %v829, 4294901760
      %v831 = vsub.f32 %v829, %v830
      %v832 = vand.u32 %v831, 4294901760
      %833 = vmatpush.msra.mxu0 %v832
      %v834 = vand.u32 %v681, 4294901760
      %v835 = vsub.f32 %v681, %v834
      %v836 = vand.u32 %v835, 4294901760
      %v837 = vsub.f32 %v835, %v836
      %v838 = vand.u32 %v837, 4294901760
      %839 = vmatpush.msra.mxu0 %v838
      %v840 = vand.u32 %v680, 4294901760
      %v841 = vsub.f32 %v680, %v840
      %v842 = vand.u32 %v841, 4294901760
      %v843 = vsub.f32 %v841, %v842
      %v844 = vand.u32 %v843, 4294901760
      %845 = vmatpush.msra.mxu0 %v844
      %v846 = vand.u32 %v679, 4294901760
      %v847 = vsub.f32 %v679, %v846
      %v848 = vand.u32 %v847, 4294901760
      %v849 = vsub.f32 %v847, %v848
      %v850 = vand.u32 %v849, 4294901760
      %851 = vmatpush.msra.mxu0 %v850
      %v852 = vand.u32 %v633, 4294901760
      %853 = vmatmul.f32.gmra.mxu0 %v852
      %v854 = vpop.f32.mrf.mxu0
      %v855 = vadd.f32 %v754, %v854
      %856 = vdwg.mxu0
      %v857 = vand.u32 %v694, 4294901760
      %v858 = vsub.f32 %v694, %v857
      %859 = vmatpush.msra.mxu0 %v858
      %v860 = vand.u32 %v693, 4294901760
      %v861 = vsub.f32 %v693, %v860
      %862 = vmatpush.msra.mxu0 %v861
      %v863 = vand.u32 %v692, 4294901760
      %v864 = vsub.f32 %v692, %v863
      %865 = vmatpush.msra.mxu0 %v864
      %v866 = vand.u32 %v691, 4294901760
      %v867 = vsub.f32 %v691, %v866
      %868 = vmatpush.msra.mxu0 %v867
      %v869 = vand.u32 %v690, 4294901760
      %v870 = vsub.f32 %v690, %v869
      %871 = vmatpush.msra.mxu0 %v870
      %v872 = vand.u32 %v689, 4294901760
      %v873 = vsub.f32 %v689, %v872
      %874 = vmatpush.msra.mxu0 %v873
      %v875 = vand.u32 %v688, 4294901760
      %v876 = vsub.f32 %v688, %v875
      %877 = vmatpush.msra.mxu0 %v876
      %v878 = vand.u32 %v687, 4294901760
      %v879 = vsub.f32 %v687, %v878
      %880 = vmatpush.msra.mxu0 %v879
      %v881 = vand.u32 %v686, 4294901760
      %v882 = vsub.f32 %v686, %v881
      %883 = vmatpush.msra.mxu0 %v882
      %v884 = vand.u32 %v685, 4294901760
      %v885 = vsub.f32 %v685, %v884
      %886 = vmatpush.msra.mxu0 %v885
      %v887 = vand.u32 %v684, 4294901760
      %v888 = vsub.f32 %v684, %v887
      %889 = vmatpush.msra.mxu0 %v888
      %v890 = vand.u32 %v683, 4294901760
      %v891 = vsub.f32 %v683, %v890
      %892 = vmatpush.msra.mxu0 %v891
      %v893 = vand.u32 %v682, 4294901760
      %v894 = vsub.f32 %v682, %v893
      %895 = vmatpush.msra.mxu0 %v894
      %v896 = vand.u32 %v681, 4294901760
      %v897 = vsub.f32 %v681, %v896
      %898 = vmatpush.msra.mxu0 %v897
      %v899 = vand.u32 %v680, 4294901760
      %v900 = vsub.f32 %v680, %v899
      %901 = vmatpush.msra.mxu0 %v900
      %v902 = vand.u32 %v679, 4294901760
      %v903 = vsub.f32 %v679, %v902
      %904 = vmatpush.msra.mxu0 %v903
      %v905 = vand.u32 %v633, 4294901760
      %v906 = vsub.f32 %v633, %v905
      %907 = vmatmul.f32.gmra.mxu0 %v906
      %v908 = vpop.f32.mrf.mxu0
      %v909 = vadd.f32 %v855, %v908
      %910 = vdwg.mxu0
      %v911 = vand.u32 %v694, 4294901760
      %912 = vmatpush.msra.mxu0 %v911
      %v913 = vand.u32 %v693, 4294901760
      %914 = vmatpush.msra.mxu0 %v913
      %v915 = vand.u32 %v692, 4294901760
      %916 = vmatpush.msra.mxu0 %v915
      %v917 = vand.u32 %v691, 4294901760
      %918 = vmatpush.msra.mxu0 %v917
      %v919 = vand.u32 %v690, 4294901760
      %920 = vmatpush.msra.mxu0 %v919
      %v921 = vand.u32 %v689, 4294901760
      %922 = vmatpush.msra.mxu0 %v921
      %v923 = vand.u32 %v688, 4294901760
      %924 = vmatpush.msra.mxu0 %v923
      %v925 = vand.u32 %v687, 4294901760
      %926 = vmatpush.msra.mxu0 %v925
      %v927 = vand.u32 %v686, 4294901760
      %928 = vmatpush.msra.mxu0 %v927
      %v929 = vand.u32 %v685, 4294901760
      %930 = vmatpush.msra.mxu0 %v929
      %v931 = vand.u32 %v684, 4294901760
      %932 = vmatpush.msra.mxu0 %v931
      %v933 = vand.u32 %v683, 4294901760
      %934 = vmatpush.msra.mxu0 %v933
      %v935 = vand.u32 %v682, 4294901760
      %936 = vmatpush.msra.mxu0 %v935
      %v937 = vand.u32 %v681, 4294901760
      %938 = vmatpush.msra.mxu0 %v937
      %v939 = vand.u32 %v680, 4294901760
      %940 = vmatpush.msra.mxu0 %v939
      %v941 = vand.u32 %v679, 4294901760
      %942 = vmatpush.msra.mxu0 %v941
      %v943 = vand.u32 %v633, 4294901760
      %v944 = vsub.f32 %v633, %v943
      %v945 = vand.u32 %v944, 4294901760
      %946 = vmatmul.f32.gmra.mxu0 %v945
      %v947 = vpop.f32.mrf.mxu0
      %v948 = vadd.f32 %v909, %v947
      %949 = vdwg.mxu0
      %v950 = vand.u32 %v694, 4294901760
      %v951 = vsub.f32 %v694, %v950
      %v952 = vand.u32 %v951, 4294901760
      %953 = vmatpush.msra.mxu0 %v952
      %v954 = vand.u32 %v693, 4294901760
      %v955 = vsub.f32 %v693, %v954
      %v956 = vand.u32 %v955, 4294901760
      %957 = vmatpush.msra.mxu0 %v956
      %v958 = vand.u32 %v692, 4294901760
      %v959 = vsub.f32 %v692, %v958
      %v960 = vand.u32 %v959, 4294901760
      %961 = vmatpush.msra.mxu0 %v960
      %v962 = vand.u32 %v691, 4294901760
      %v963 = vsub.f32 %v691, %v962
      %v964 = vand.u32 %v963, 4294901760
      %965 = vmatpush.msra.mxu0 %v964
      %v966 = vand.u32 %v690, 4294901760
      %v967 = vsub.f32 %v690, %v966
      %v968 = vand.u32 %v967, 4294901760
      %969 = vmatpush.msra.mxu0 %v968
      %v970 = vand.u32 %v689, 4294901760
      %v971 = vsub.f32 %v689, %v970
      %v972 = vand.u32 %v971, 4294901760
      %973 = vmatpush.msra.mxu0 %v972
      %v974 = vand.u32 %v688, 4294901760
      %v975 = vsub.f32 %v688, %v974
      %v976 = vand.u32 %v975, 4294901760
      %977 = vmatpush.msra.mxu0 %v976
      %v978 = vand.u32 %v687, 4294901760
      %v979 = vsub.f32 %v687, %v978
      %v980 = vand.u32 %v979, 4294901760
      %981 = vmatpush.msra.mxu0 %v980
      %v982 = vand.u32 %v686, 4294901760
      %v983 = vsub.f32 %v686, %v982
      %v984 = vand.u32 %v983, 4294901760
      %985 = vmatpush.msra.mxu0 %v984
      %v986 = vand.u32 %v685, 4294901760
      %v987 = vsub.f32 %v685, %v986
      %v988 = vand.u32 %v987, 4294901760
      %989 = vmatpush.msra.mxu0 %v988
      %v990 = vand.u32 %v684, 4294901760
      %v991 = vsub.f32 %v684, %v990
      %v992 = vand.u32 %v991, 4294901760
      %993 = vmatpush.msra.mxu0 %v992
      %v994 = vand.u32 %v683, 4294901760
      %v995 = vsub.f32 %v683, %v994
      %v996 = vand.u32 %v995, 4294901760
      %997 = vmatpush.msra.mxu0 %v996
      %v998 = vand.u32 %v682, 4294901760
      %v999 = vsub.f32 %v682, %v998
      %v1000 = vand.u32 %v999, 4294901760
      %1001 = vmatpush.msra.mxu0 %v1000
      %v1002 = vand.u32 %v681, 4294901760
      %v1003 = vsub.f32 %v681, %v1002
      %v1004 = vand.u32 %v1003, 4294901760
      %1005 = vmatpush.msra.mxu0 %v1004
      %v1006 = vand.u32 %v680, 4294901760
      %v1007 = vsub.f32 %v680, %v1006
      %v1008 = vand.u32 %v1007, 4294901760
      %1009 = vmatpush.msra.mxu0 %v1008
      %v1010 = vand.u32 %v679, 4294901760
      %v1011 = vsub.f32 %v679, %v1010
      %v1012 = vand.u32 %v1011, 4294901760
      %1013 = vmatpush.msra.mxu0 %v1012
      %v1014 = vand.u32 %v633, 4294901760
      %1015 = vmatmul.f32.gmra.mxu0 %v1014
      %v1016 = vpop.f32.mrf.mxu0
      %v1017 = vadd.f32 %v948, %v1016
      %1018 = vdwg.mxu0
      %v1019 = vand.u32 %v694, 4294901760
      %1020 = vmatpush.msra.mxu0 %v1019
      %v1021 = vand.u32 %v693, 4294901760
      %1022 = vmatpush.msra.mxu0 %v1021
      %v1023 = vand.u32 %v692, 4294901760
      %1024 = vmatpush.msra.mxu0 %v1023
      %v1025 = vand.u32 %v691, 4294901760
      %1026 = vmatpush.msra.mxu0 %v1025
      %v1027 = vand.u32 %v690, 4294901760
      %1028 = vmatpush.msra.mxu0 %v1027
      %v1029 = vand.u32 %v689, 4294901760
      %1030 = vmatpush.msra.mxu0 %v1029
      %v1031 = vand.u32 %v688, 4294901760
      %1032 = vmatpush.msra.mxu0 %v1031
      %v1033 = vand.u32 %v687, 4294901760
      %1034 = vmatpush.msra.mxu0 %v1033
      %v1035 = vand.u32 %v686, 4294901760
      %1036 = vmatpush.msra.mxu0 %v1035
      %v1037 = vand.u32 %v685, 4294901760
      %1038 = vmatpush.msra.mxu0 %v1037
      %v1039 = vand.u32 %v684, 4294901760
      %1040 = vmatpush.msra.mxu0 %v1039
      %v1041 = vand.u32 %v683, 4294901760
      %1042 = vmatpush.msra.mxu0 %v1041
      %v1043 = vand.u32 %v682, 4294901760
      %1044 = vmatpush.msra.mxu0 %v1043
      %v1045 = vand.u32 %v681, 4294901760
      %1046 = vmatpush.msra.mxu0 %v1045
      %v1047 = vand.u32 %v680, 4294901760
      %1048 = vmatpush.msra.mxu0 %v1047
      %v1049 = vand.u32 %v679, 4294901760
      %1050 = vmatpush.msra.mxu0 %v1049
      %v1051 = vand.u32 %v633, 4294901760
      %1052 = vmatmul.f32.gmra.mxu0 %v1051
      %v1053 = vpop.f32.mrf.mxu0
      %v1054 = vadd.f32 %v1017, %v1053
      %1055 = vdwg.mxu0
      %v1056 = vand.u32 %v710, 4294901760
      %1057 = vmatpush.msra.mxu0 %v1056
      %v1058 = vand.u32 %v709, 4294901760
      %1059 = vmatpush.msra.mxu0 %v1058
      %v1060 = vand.u32 %v708, 4294901760
      %1061 = vmatpush.msra.mxu0 %v1060
      %v1062 = vand.u32 %v707, 4294901760
      %1063 = vmatpush.msra.mxu0 %v1062
      %v1064 = vand.u32 %v706, 4294901760
      %1065 = vmatpush.msra.mxu0 %v1064
      %v1066 = vand.u32 %v705, 4294901760
      %1067 = vmatpush.msra.mxu0 %v1066
      %v1068 = vand.u32 %v704, 4294901760
      %1069 = vmatpush.msra.mxu0 %v1068
      %v1070 = vand.u32 %v703, 4294901760
      %1071 = vmatpush.msra.mxu0 %v1070
      %v1072 = vand.u32 %v702, 4294901760
      %1073 = vmatpush.msra.mxu0 %v1072
      %v1074 = vand.u32 %v701, 4294901760
      %1075 = vmatpush.msra.mxu0 %v1074
      %v1076 = vand.u32 %v700, 4294901760
      %1077 = vmatpush.msra.mxu0 %v1076
      %v1078 = vand.u32 %v699, 4294901760
      %1079 = vmatpush.msra.mxu0 %v1078
      %v1080 = vand.u32 %v698, 4294901760
      %1081 = vmatpush.msra.mxu0 %v1080
      %v1082 = vand.u32 %v697, 4294901760
      %1083 = vmatpush.msra.mxu0 %v1082
      %v1084 = vand.u32 %v696, 4294901760
      %1085 = vmatpush.msra.mxu0 %v1084
      %v1086 = vand.u32 %v695, 4294901760
      %1087 = vmatpush.msra.mxu0 %v1086
      %v1088 = vand.u32 %v640, 4294901760
      %v1089 = vsub.f32 %v640, %v1088
      %v1090 = vand.u32 %v1089, 4294901760
      %v1091 = vsub.f32 %v1089, %v1090
      %v1092 = vand.u32 %v1091, 4294901760
      %1093 = vmatmul.f32.gmra.mxu0 %v1092
      %v1094 = vpop.f32.mrf.mxu0
      %v1095 = vadd.f32 %v1054, %v1094
      %1096 = vdwg.mxu0
      %v1097 = vand.u32 %v710, 4294901760
      %v1098 = vsub.f32 %v710, %v1097
      %v1099 = vand.u32 %v1098, 4294901760
      %v1100 = vsub.f32 %v1098, %v1099
      %v1101 = vand.u32 %v1100, 4294901760
      %1102 = vmatpush.msra.mxu0 %v1101
      %v1103 = vand.u32 %v709, 4294901760
      %v1104 = vsub.f32 %v709, %v1103
      %v1105 = vand.u32 %v1104, 4294901760
      %v1106 = vsub.f32 %v1104, %v1105
      %v1107 = vand.u32 %v1106, 4294901760
      %1108 = vmatpush.msra.mxu0 %v1107
      %v1109 = vand.u32 %v708, 4294901760
      %v1110 = vsub.f32 %v708, %v1109
      %v1111 = vand.u32 %v1110, 4294901760
      %v1112 = vsub.f32 %v1110, %v1111
      %v1113 = vand.u32 %v1112, 4294901760
      %1114 = vmatpush.msra.mxu0 %v1113
      %v1115 = vand.u32 %v707, 4294901760
      %v1116 = vsub.f32 %v707, %v1115
      %v1117 = vand.u32 %v1116, 4294901760
      %v1118 = vsub.f32 %v1116, %v1117
      %v1119 = vand.u32 %v1118, 4294901760
      %1120 = vmatpush.msra.mxu0 %v1119
      %v1121 = vand.u32 %v706, 4294901760
      %v1122 = vsub.f32 %v706, %v1121
      %v1123 = vand.u32 %v1122, 4294901760
      %v1124 = vsub.f32 %v1122, %v1123
      %v1125 = vand.u32 %v1124, 4294901760
      %1126 = vmatpush.msra.mxu0 %v1125
      %v1127 = vand.u32 %v705, 4294901760
      %v1128 = vsub.f32 %v705, %v1127
      %v1129 = vand.u32 %v1128, 4294901760
      %v1130 = vsub.f32 %v1128, %v1129
      %v1131 = vand.u32 %v1130, 4294901760
      %1132 = vmatpush.msra.mxu0 %v1131
      %v1133 = vand.u32 %v704, 4294901760
      %v1134 = vsub.f32 %v704, %v1133
      %v1135 = vand.u32 %v1134, 4294901760
      %v1136 = vsub.f32 %v1134, %v1135
      %v1137 = vand.u32 %v1136, 4294901760
      %1138 = vmatpush.msra.mxu0 %v1137
      %v1139 = vand.u32 %v703, 4294901760
      %v1140 = vsub.f32 %v703, %v1139
      %v1141 = vand.u32 %v1140, 4294901760
      %v1142 = vsub.f32 %v1140, %v1141
      %v1143 = vand.u32 %v1142, 4294901760
      %1144 = vmatpush.msra.mxu0 %v1143
      %v1145 = vand.u32 %v702, 4294901760
      %v1146 = vsub.f32 %v702, %v1145
      %v1147 = vand.u32 %v1146, 4294901760
      %v1148 = vsub.f32 %v1146, %v1147
      %v1149 = vand.u32 %v1148, 4294901760
      %1150 = vmatpush.msra.mxu0 %v1149
      %v1151 = vand.u32 %v701, 4294901760
      %v1152 = vsub.f32 %v701, %v1151
      %v1153 = vand.u32 %v1152, 4294901760
      %v1154 = vsub.f32 %v1152, %v1153
      %v1155 = vand.u32 %v1154, 4294901760
      %1156 = vmatpush.msra.mxu0 %v1155
      %v1157 = vand.u32 %v700, 4294901760
      %v1158 = vsub.f32 %v700, %v1157
      %v1159 = vand.u32 %v1158, 4294901760
      %v1160 = vsub.f32 %v1158, %v1159
      %v1161 = vand.u32 %v1160, 4294901760
      %1162 = vmatpush.msra.mxu0 %v1161
      %v1163 = vand.u32 %v699, 4294901760
      %v1164 = vsub.f32 %v699, %v1163
      %v1165 = vand.u32 %v1164, 4294901760
      %v1166 = vsub.f32 %v1164, %v1165
      %v1167 = vand.u32 %v1166, 4294901760
      %1168 = vmatpush.msra.mxu0 %v1167
      %v1169 = vand.u32 %v698, 4294901760
      %v1170 = vsub.f32 %v698, %v1169
      %v1171 = vand.u32 %v1170, 4294901760
      %v1172 = vsub.f32 %v1170, %v1171
      %v1173 = vand.u32 %v1172, 4294901760
      %1174 = vmatpush.msra.mxu0 %v1173
      %v1175 = vand.u32 %v697, 4294901760
      %v1176 = vsub.f32 %v697, %v1175
      %v1177 = vand.u32 %v1176, 4294901760
      %v1178 = vsub.f32 %v1176, %v1177
      %v1179 = vand.u32 %v1178, 4294901760
      %1180 = vmatpush.msra.mxu0 %v1179
      %v1181 = vand.u32 %v696, 4294901760
      %v1182 = vsub.f32 %v696, %v1181
      %v1183 = vand.u32 %v1182, 4294901760
      %v1184 = vsub.f32 %v1182, %v1183
      %v1185 = vand.u32 %v1184, 4294901760
      %1186 = vmatpush.msra.mxu0 %v1185
      %v1187 = vand.u32 %v695, 4294901760
      %v1188 = vsub.f32 %v695, %v1187
      %v1189 = vand.u32 %v1188, 4294901760
      %v1190 = vsub.f32 %v1188, %v1189
      %v1191 = vand.u32 %v1190, 4294901760
      %1192 = vmatpush.msra.mxu0 %v1191
      %v1193 = vand.u32 %v640, 4294901760
      %1194 = vmatmul.f32.gmra.mxu0 %v1193
      %v1195 = vpop.f32.mrf.mxu0
      %v1196 = vadd.f32 %v1095, %v1195
      %1197 = vdwg.mxu0
      %v1198 = vand.u32 %v710, 4294901760
      %v1199 = vsub.f32 %v710, %v1198
      %1200 = vmatpush.msra.mxu0 %v1199
      %v1201 = vand.u32 %v709, 4294901760
      %v1202 = vsub.f32 %v709, %v1201
      %1203 = vmatpush.msra.mxu0 %v1202
      %v1204 = vand.u32 %v708, 4294901760
      %v1205 = vsub.f32 %v708, %v1204
      %1206 = vmatpush.msra.mxu0 %v1205
      %v1207 = vand.u32 %v707, 4294901760
      %v1208 = vsub.f32 %v707, %v1207
      %1209 = vmatpush.msra.mxu0 %v1208
      %v1210 = vand.u32 %v706, 4294901760
      %v1211 = vsub.f32 %v706, %v1210
      %1212 = vmatpush.msra.mxu0 %v1211
      %v1213 = vand.u32 %v705, 4294901760
      %v1214 = vsub.f32 %v705, %v1213
      %1215 = vmatpush.msra.mxu0 %v1214
      %v1216 = vand.u32 %v704, 4294901760
      %v1217 = vsub.f32 %v704, %v1216
      %1218 = vmatpush.msra.mxu0 %v1217
      %v1219 = vand.u32 %v703, 4294901760
      %v1220 = vsub.f32 %v703, %v1219
      %1221 = vmatpush.msra.mxu0 %v1220
      %v1222 = vand.u32 %v702, 4294901760
      %v1223 = vsub.f32 %v702, %v1222
      %1224 = vmatpush.msra.mxu0 %v1223
      %v1225 = vand.u32 %v701, 4294901760
      %v1226 = vsub.f32 %v701, %v1225
      %1227 = vmatpush.msra.mxu0 %v1226
      %v1228 = vand.u32 %v700, 4294901760
      %v1229 = vsub.f32 %v700, %v1228
      %1230 = vmatpush.msra.mxu0 %v1229
      %v1231 = vand.u32 %v699, 4294901760
      %v1232 = vsub.f32 %v699, %v1231
      %1233 = vmatpush.msra.mxu0 %v1232
      %v1234 = vand.u32 %v698, 4294901760
      %v1235 = vsub.f32 %v698, %v1234
      %1236 = vmatpush.msra.mxu0 %v1235
      %v1237 = vand.u32 %v697, 4294901760
      %v1238 = vsub.f32 %v697, %v1237
      %1239 = vmatpush.msra.mxu0 %v1238
      %v1240 = vand.u32 %v696, 4294901760
      %v1241 = vsub.f32 %v696, %v1240
      %1242 = vmatpush.msra.mxu0 %v1241
      %v1243 = vand.u32 %v695, 4294901760
      %v1244 = vsub.f32 %v695, %v1243
      %1245 = vmatpush.msra.mxu0 %v1244
      %v1246 = vand.u32 %v640, 4294901760
      %v1247 = vsub.f32 %v640, %v1246
      %1248 = vmatmul.f32.gmra.mxu0 %v1247
      %v1249 = vpop.f32.mrf.mxu0
      %v1250 = vadd.f32 %v1196, %v1249
      %1251 = vdwg.mxu0
      %v1252 = vand.u32 %v710, 4294901760
      %1253 = vmatpush.msra.mxu0 %v1252
      %v1254 = vand.u32 %v709, 4294901760
      %1255 = vmatpush.msra.mxu0 %v1254
      %v1256 = vand.u32 %v708, 4294901760
      %1257 = vmatpush.msra.mxu0 %v1256
      %v1258 = vand.u32 %v707, 4294901760
      %1259 = vmatpush.msra.mxu0 %v1258
      %v1260 = vand.u32 %v706, 4294901760
      %1261 = vmatpush.msra.mxu0 %v1260
      %v1262 = vand.u32 %v705, 4294901760
      %1263 = vmatpush.msra.mxu0 %v1262
      %v1264 = vand.u32 %v704, 4294901760
      %1265 = vmatpush.msra.mxu0 %v1264
      %v1266 = vand.u32 %v703, 4294901760
      %1267 = vmatpush.msra.mxu0 %v1266
      %v1268 = vand.u32 %v702, 4294901760
      %1269 = vmatpush.msra.mxu0 %v1268
      %v1270 = vand.u32 %v701, 4294901760
      %1271 = vmatpush.msra.mxu0 %v1270
      %v1272 = vand.u32 %v700, 4294901760
      %1273 = vmatpush.msra.mxu0 %v1272
      %v1274 = vand.u32 %v699, 4294901760
      %1275 = vmatpush.msra.mxu0 %v1274
      %v1276 = vand.u32 %v698, 4294901760
      %1277 = vmatpush.msra.mxu0 %v1276
      %v1278 = vand.u32 %v697, 4294901760
      %1279 = vmatpush.msra.mxu0 %v1278
      %v1280 = vand.u32 %v696, 4294901760
      %1281 = vmatpush.msra.mxu0 %v1280
      %v1282 = vand.u32 %v695, 4294901760
      %1283 = vmatpush.msra.mxu0 %v1282
      %v1284 = vand.u32 %v640, 4294901760
      %v1285 = vsub.f32 %v640, %v1284
      %v1286 = vand.u32 %v1285, 4294901760
      %1287 = vmatmul.f32.gmra.mxu0 %v1286
      %v1288 = vpop.f32.mrf.mxu0
      %v1289 = vadd.f32 %v1250, %v1288
      %1290 = vdwg.mxu0
      %v1291 = vand.u32 %v710, 4294901760
      %v1292 = vsub.f32 %v710, %v1291
      %v1293 = vand.u32 %v1292, 4294901760
      %1294 = vmatpush.msra.mxu0 %v1293
      %v1295 = vand.u32 %v709, 4294901760
      %v1296 = vsub.f32 %v709, %v1295
      %v1297 = vand.u32 %v1296, 4294901760
      %1298 = vmatpush.msra.mxu0 %v1297
      %v1299 = vand.u32 %v708, 4294901760
      %v1300 = vsub.f32 %v708, %v1299
      %v1301 = vand.u32 %v1300, 4294901760
      %1302 = vmatpush.msra.mxu0 %v1301
      %v1303 = vand.u32 %v707, 4294901760
      %v1304 = vsub.f32 %v707, %v1303
      %v1305 = vand.u32 %v1304, 4294901760
      %1306 = vmatpush.msra.mxu0 %v1305
      %v1307 = vand.u32 %v706, 4294901760
      %v1308 = vsub.f32 %v706, %v1307
      %v1309 = vand.u32 %v1308, 4294901760
      %1310 = vmatpush.msra.mxu0 %v1309
      %v1311 = vand.u32 %v705, 4294901760
      %v1312 = vsub.f32 %v705, %v1311
      %v1313 = vand.u32 %v1312, 4294901760
      %1314 = vmatpush.msra.mxu0 %v1313
      %v1315 = vand.u32 %v704, 4294901760
      %v1316 = vsub.f32 %v704, %v1315
      %v1317 = vand.u32 %v1316, 4294901760
      %1318 = vmatpush.msra.mxu0 %v1317
      %v1319 = vand.u32 %v703, 4294901760
      %v1320 = vsub.f32 %v703, %v1319
      %v1321 = vand.u32 %v1320, 4294901760
      %1322 = vmatpush.msra.mxu0 %v1321
      %v1323 = vand.u32 %v702, 4294901760
      %v1324 = vsub.f32 %v702, %v1323
      %v1325 = vand.u32 %v1324, 4294901760
      %1326 = vmatpush.msra.mxu0 %v1325
      %v1327 = vand.u32 %v701, 4294901760
      %v1328 = vsub.f32 %v701, %v1327
      %v1329 = vand.u32 %v1328, 4294901760
      %1330 = vmatpush.msra.mxu0 %v1329
      %v1331 = vand.u32 %v700, 4294901760
      %v1332 = vsub.f32 %v700, %v1331
      %v1333 = vand.u32 %v1332, 4294901760
      %1334 = vmatpush.msra.mxu0 %v1333
      %v1335 = vand.u32 %v699, 4294901760
      %v1336 = vsub.f32 %v699, %v1335
      %v1337 = vand.u32 %v1336, 4294901760
      %1338 = vmatpush.msra.mxu0 %v1337
      %v1339 = vand.u32 %v698, 4294901760
      %v1340 = vsub.f32 %v698, %v1339
      %v1341 = vand.u32 %v1340, 4294901760
      %1342 = vmatpush.msra.mxu0 %v1341
      %v1343 = vand.u32 %v697, 4294901760
      %v1344 = vsub.f32 %v697, %v1343
      %v1345 = vand.u32 %v1344, 4294901760
      %1346 = vmatpush.msra.mxu0 %v1345
      %v1347 = vand.u32 %v696, 4294901760
      %v1348 = vsub.f32 %v696, %v1347
      %v1349 = vand.u32 %v1348, 4294901760
      %1350 = vmatpush.msra.mxu0 %v1349
      %v1351 = vand.u32 %v695, 4294901760
      %v1352 = vsub.f32 %v695, %v1351
      %v1353 = vand.u32 %v1352, 4294901760
      %1354 = vmatpush.msra.mxu0 %v1353
      %v1355 = vand.u32 %v640, 4294901760
      %1356 = vmatmul.f32.gmra.mxu0 %v1355
      %v1357 = vpop.f32.mrf.mxu0
      %v1358 = vadd.f32 %v1289, %v1357
      %1359 = vdwg.mxu0
      %v1360 = vand.u32 %v710, 4294901760
      %1361 = vmatpush.msra.mxu0 %v1360
      %v1362 = vand.u32 %v709, 4294901760
      %1363 = vmatpush.msra.mxu0 %v1362
      %v1364 = vand.u32 %v708, 4294901760
      %1365 = vmatpush.msra.mxu0 %v1364
      %v1366 = vand.u32 %v707, 4294901760
      %1367 = vmatpush.msra.mxu0 %v1366
      %v1368 = vand.u32 %v706, 4294901760
      %1369 = vmatpush.msra.mxu0 %v1368
      %v1370 = vand.u32 %v705, 4294901760
      %1371 = vmatpush.msra.mxu0 %v1370
      %v1372 = vand.u32 %v704, 4294901760
      %1373 = vmatpush.msra.mxu0 %v1372
      %v1374 = vand.u32 %v703, 4294901760
      %1375 = vmatpush.msra.mxu0 %v1374
      %v1376 = vand.u32 %v702, 4294901760
      %1377 = vmatpush.msra.mxu0 %v1376
      %v1378 = vand.u32 %v701, 4294901760
      %1379 = vmatpush.msra.mxu0 %v1378
      %v1380 = vand.u32 %v700, 4294901760
      %1381 = vmatpush.msra.mxu0 %v1380
      %v1382 = vand.u32 %v699, 4294901760
      %1383 = vmatpush.msra.mxu0 %v1382
      %v1384 = vand.u32 %v698, 4294901760
      %1385 = vmatpush.msra.mxu0 %v1384
      %v1386 = vand.u32 %v697, 4294901760
      %1387 = vmatpush.msra.mxu0 %v1386
      %v1388 = vand.u32 %v696, 4294901760
      %1389 = vmatpush.msra.mxu0 %v1388
      %v1390 = vand.u32 %v695, 4294901760
      %1391 = vmatpush.msra.mxu0 %v1390
      %v1392 = vand.u32 %v640, 4294901760
      %1393 = vmatmul.f32.gmra.mxu0 %v1392
      %v1394 = vpop.f32.mrf.mxu0
      %v1395 = vadd.f32 %v1358, %v1394
      %1396 = vdwg.mxu0
      %1397 = vmatpush.msra.mxu0 0.0
      %1398 = vmatpush.msra.mxu0 0.0
      %1399 = vmatpush.msra.mxu0 0.0
      %1400 = vmatpush.msra.mxu0 0.0
      %1401 = vmatpush.msra.mxu0 0.0
      %1402 = vmatpush.msra.mxu0 0.0
      %1403 = vmatpush.msra.mxu0 0.0
      %1404 = vmatpush.msra.mxu0 0.0
      %1405 = vmatpush.msra.mxu0 0.0
      %1406 = vmatpush.msra.mxu0 0.0
      %1407 = vmatpush.msra.mxu0 0.0
      %1408 = vmatpush.msra.mxu0 0.0
      %1409 = vmatpush.msra.mxu0 0.0
      %1410 = vmatpush.msra.mxu0 0.0
      %1411 = vmatpush.msra.mxu0 0.0
      %v1412 = vand.u32 %v711, 4294901760
      %1413 = vmatpush.msra.mxu0 %v1412
      %v1414 = vand.u32 %v713, 4294901760
      %v1415 = vsub.f32 %v713, %v1414
      %v1416 = vand.u32 %v1415, 4294901760
      %v1417 = vsub.f32 %v1415, %v1416
      %v1418 = vand.u32 %v1417, 4294901760
      %1419 = vmatmul.f32.gmra.mxu0 %v1418
      %v1420 = vpop.f32.mrf.mxu0
      %v1421 = vadd.f32 %v1395, %v1420
      %1422 = vdwg.mxu0
      %1423 = vmatpush.msra.mxu0 0.0
      %1424 = vmatpush.msra.mxu0 0.0
      %1425 = vmatpush.msra.mxu0 0.0
      %1426 = vmatpush.msra.mxu0 0.0
      %1427 = vmatpush.msra.mxu0 0.0
      %1428 = vmatpush.msra.mxu0 0.0
      %1429 = vmatpush.msra.mxu0 0.0
      %1430 = vmatpush.msra.mxu0 0.0
      %1431 = vmatpush.msra.mxu0 0.0
      %1432 = vmatpush.msra.mxu0 0.0
      %1433 = vmatpush.msra.mxu0 0.0
      %1434 = vmatpush.msra.mxu0 0.0
      %1435 = vmatpush.msra.mxu0 0.0
      %1436 = vmatpush.msra.mxu0 0.0
      %1437 = vmatpush.msra.mxu0 0.0
      %v1438 = vand.u32 %v711, 4294901760
      %v1439 = vsub.f32 %v711, %v1438
      %v1440 = vand.u32 %v1439, 4294901760
      %v1441 = vsub.f32 %v1439, %v1440
      %v1442 = vand.u32 %v1441, 4294901760
      %1443 = vmatpush.msra.mxu0 %v1442
      %v1444 = vand.u32 %v713, 4294901760
      %1445 = vmatmul.f32.gmra.mxu0 %v1444
      %v1446 = vpop.f32.mrf.mxu0
      %v1447 = vadd.f32 %v1421, %v1446
      %1448 = vdwg.mxu0
      %1449 = vmatpush.msra.mxu0 0.0
      %1450 = vmatpush.msra.mxu0 0.0
      %1451 = vmatpush.msra.mxu0 0.0
      %1452 = vmatpush.msra.mxu0 0.0
      %1453 = vmatpush.msra.mxu0 0.0
      %1454 = vmatpush.msra.mxu0 0.0
      %1455 = vmatpush.msra.mxu0 0.0
      %1456 = vmatpush.msra.mxu0 0.0
      %1457 = vmatpush.msra.mxu0 0.0
      %1458 = vmatpush.msra.mxu0 0.0
      %1459 = vmatpush.msra.mxu0 0.0
      %1460 = vmatpush.msra.mxu0 0.0
      %1461 = vmatpush.msra.mxu0 0.0
      %1462 = vmatpush.msra.mxu0 0.0
      %1463 = vmatpush.msra.mxu0 0.0
      %v1464 = vand.u32 %v711, 4294901760
      %v1465 = vsub.f32 %v711, %v1464
      %1466 = vmatpush.msra.mxu0 %v1465
      %v1467 = vand.u32 %v713, 4294901760
      %v1468 = vsub.f32 %v713, %v1467
      %1469 = vmatmul.f32.gmra.mxu0 %v1468
      %v1470 = vpop.f32.mrf.mxu0
      %v1471 = vadd.f32 %v1447, %v1470
      %1472 = vdwg.mxu0
      %1473 = vmatpush.msra.mxu0 0.0
      %1474 = vmatpush.msra.mxu0 0.0
      %1475 = vmatpush.msra.mxu0 0.0
      %1476 = vmatpush.msra.mxu0 0.0
      %1477 = vmatpush.msra.mxu0 0.0
      %1478 = vmatpush.msra.mxu0 0.0
      %1479 = vmatpush.msra.mxu0 0.0
      %1480 = vmatpush.msra.mxu0 0.0
      %1481 = vmatpush.msra.mxu0 0.0
      %1482 = vmatpush.msra.mxu0 0.0
      %1483 = vmatpush.msra.mxu0 0.0
      %1484 = vmatpush.msra.mxu0 0.0
      %1485 = vmatpush.msra.mxu0 0.0
      %1486 = vmatpush.msra.mxu0 0.0
      %1487 = vmatpush.msra.mxu0 0.0
      %v1488 = vand.u32 %v711, 4294901760
      %1489 = vmatpush.msra.mxu0 %v1488
      %v1490 = vand.u32 %v713, 4294901760
      %v1491 = vsub.f32 %v713, %v1490
      %v1492 = vand.u32 %v1491, 4294901760
      %1493 = vmatmul.f32.gmra.mxu0 %v1492
      %v1494 = vpop.f32.mrf.mxu0
      %v1495 = vadd.f32 %v1471, %v1494
      %1496 = vdwg.mxu0
      %1497 = vmatpush.msra.mxu0 0.0
      %1498 = vmatpush.msra.mxu0 0.0
      %1499 = vmatpush.msra.mxu0 0.0
      %1500 = vmatpush.msra.mxu0 0.0
      %1501 = vmatpush.msra.mxu0 0.0
      %1502 = vmatpush.msra.mxu0 0.0
      %1503 = vmatpush.msra.mxu0 0.0
      %1504 = vmatpush.msra.mxu0 0.0
      %1505 = vmatpush.msra.mxu0 0.0
      %1506 = vmatpush.msra.mxu0 0.0
      %1507 = vmatpush.msra.mxu0 0.0
      %1508 = vmatpush.msra.mxu0 0.0
      %1509 = vmatpush.msra.mxu0 0.0
      %1510 = vmatpush.msra.mxu0 0.0
      %1511 = vmatpush.msra.mxu0 0.0
      %v1512 = vand.u32 %v711, 4294901760
      %v1513 = vsub.f32 %v711, %v1512
      %v1514 = vand.u32 %v1513, 4294901760
      %1515 = vmatpush.msra.mxu0 %v1514
      %v1516 = vand.u32 %v713, 4294901760
      %1517 = vmatmul.f32.gmra.mxu0 %v1516
      %v1518 = vpop.f32.mrf.mxu0
      %v1519 = vadd.f32 %v1495, %v1518
      %1520 = vdwg.mxu0
      %1521 = vmatpush.msra.mxu0 0.0
      %1522 = vmatpush.msra.mxu0 0.0
      %1523 = vmatpush.msra.mxu0 0.0
      %1524 = vmatpush.msra.mxu0 0.0
      %1525 = vmatpush.msra.mxu0 0.0
      %1526 = vmatpush.msra.mxu0 0.0
      %1527 = vmatpush.msra.mxu0 0.0
      %1528 = vmatpush.msra.mxu0 0.0
      %1529 = vmatpush.msra.mxu0 0.0
      %1530 = vmatpush.msra.mxu0 0.0
      %1531 = vmatpush.msra.mxu0 0.0
      %1532 = vmatpush.msra.mxu0 0.0
      %1533 = vmatpush.msra.mxu0 0.0
      %1534 = vmatpush.msra.mxu0 0.0
      %1535 = vmatpush.msra.mxu0 0.0
      %v1536 = vand.u32 %v711, 4294901760
      %1537 = vmatpush.msra.mxu0 %v1536
      %v1538 = vand.u32 %v713, 4294901760
      %1539 = vmatmul.f32.gmra.mxu0 %v1538
      %v1540 = vpop.f32.mrf.mxu0
      %v1541 = vadd.f32 %v1519, %v1540
      %1542 = vdwg.mxu0
      %vm1543 = vcmask 57344
      %1544 = vst.msk [vmem:[%s235] sm:$0x1] %vm1543, %v1541
      %v1546 = vsel %vm341, %v678, 0
      %v1548 = vand.u32 %v694, 4294901760
      %1549 = vmatpush.msra.mxu0 %v1548
      %v1550 = vand.u32 %v693, 4294901760
      %1551 = vmatpush.msra.mxu0 %v1550
      %v1552 = vand.u32 %v692, 4294901760
      %1553 = vmatpush.msra.mxu0 %v1552
      %v1554 = vand.u32 %v691, 4294901760
      %1555 = vmatpush.msra.mxu0 %v1554
      %v1556 = vand.u32 %v690, 4294901760
      %1557 = vmatpush.msra.mxu0 %v1556
      %v1558 = vand.u32 %v689, 4294901760
      %1559 = vmatpush.msra.mxu0 %v1558
      %v1560 = vand.u32 %v688, 4294901760
      %1561 = vmatpush.msra.mxu0 %v1560
      %v1562 = vand.u32 %v687, 4294901760
      %1563 = vmatpush.msra.mxu0 %v1562
      %v1564 = vand.u32 %v686, 4294901760
      %1565 = vmatpush.msra.mxu0 %v1564
      %v1566 = vand.u32 %v685, 4294901760
      %1567 = vmatpush.msra.mxu0 %v1566
      %v1568 = vand.u32 %v684, 4294901760
      %1569 = vmatpush.msra.mxu0 %v1568
      %v1570 = vand.u32 %v683, 4294901760
      %1571 = vmatpush.msra.mxu0 %v1570
      %v1572 = vand.u32 %v682, 4294901760
      %1573 = vmatpush.msra.mxu0 %v1572
      %v1574 = vand.u32 %v681, 4294901760
      %1575 = vmatpush.msra.mxu0 %v1574
      %v1576 = vand.u32 %v680, 4294901760
      %1577 = vmatpush.msra.mxu0 %v1576
      %v1578 = vand.u32 %v679, 4294901760
      %1579 = vmatpush.msra.mxu0 %v1578
      %v1580 = vand.u32 %v662, 4294901760
      %v1581 = vsub.f32 %v662, %v1580
      %v1582 = vand.u32 %v1581, 4294901760
      %v1583 = vsub.f32 %v1581, %v1582
      %v1584 = vand.u32 %v1583, 4294901760
      %1585 = vmatmul.f32.gmra.mxu0 %v1584
      %v1586 = vpop.f32.mrf.mxu0
      %v1587 = vadd.f32 0.0, %v1586
      %1588 = vdwg.mxu0
      %v1589 = vand.u32 %v694, 4294901760
      %v1590 = vsub.f32 %v694, %v1589
      %v1591 = vand.u32 %v1590, 4294901760
      %v1592 = vsub.f32 %v1590, %v1591
      %v1593 = vand.u32 %v1592, 4294901760
      %1594 = vmatpush.msra.mxu0 %v1593
      %v1595 = vand.u32 %v693, 4294901760
      %v1596 = vsub.f32 %v693, %v1595
      %v1597 = vand.u32 %v1596, 4294901760
      %v1598 = vsub.f32 %v1596, %v1597
      %v1599 = vand.u32 %v1598, 4294901760
      %1600 = vmatpush.msra.mxu0 %v1599
      %v1601 = vand.u32 %v692, 4294901760
      %v1602 = vsub.f32 %v692, %v1601
      %v1603 = vand.u32 %v1602, 4294901760
      %v1604 = vsub.f32 %v1602, %v1603
      %v1605 = vand.u32 %v1604, 4294901760
      %1606 = vmatpush.msra.mxu0 %v1605
      %v1607 = vand.u32 %v691, 4294901760
      %v1608 = vsub.f32 %v691, %v1607
      %v1609 = vand.u32 %v1608, 4294901760
      %v1610 = vsub.f32 %v1608, %v1609
      %v1611 = vand.u32 %v1610, 4294901760
      %1612 = vmatpush.msra.mxu0 %v1611
      %v1613 = vand.u32 %v690, 4294901760
      %v1614 = vsub.f32 %v690, %v1613
      %v1615 = vand.u32 %v1614, 4294901760
      %v1616 = vsub.f32 %v1614, %v1615
      %v1617 = vand.u32 %v1616, 4294901760
      %1618 = vmatpush.msra.mxu0 %v1617
      %v1619 = vand.u32 %v689, 4294901760
      %v1620 = vsub.f32 %v689, %v1619
      %v1621 = vand.u32 %v1620, 4294901760
      %v1622 = vsub.f32 %v1620, %v1621
      %v1623 = vand.u32 %v1622, 4294901760
      %1624 = vmatpush.msra.mxu0 %v1623
      %v1625 = vand.u32 %v688, 4294901760
      %v1626 = vsub.f32 %v688, %v1625
      %v1627 = vand.u32 %v1626, 4294901760
      %v1628 = vsub.f32 %v1626, %v1627
      %v1629 = vand.u32 %v1628, 4294901760
      %1630 = vmatpush.msra.mxu0 %v1629
      %v1631 = vand.u32 %v687, 4294901760
      %v1632 = vsub.f32 %v687, %v1631
      %v1633 = vand.u32 %v1632, 4294901760
      %v1634 = vsub.f32 %v1632, %v1633
      %v1635 = vand.u32 %v1634, 4294901760
      %1636 = vmatpush.msra.mxu0 %v1635
      %v1637 = vand.u32 %v686, 4294901760
      %v1638 = vsub.f32 %v686, %v1637
      %v1639 = vand.u32 %v1638, 4294901760
      %v1640 = vsub.f32 %v1638, %v1639
      %v1641 = vand.u32 %v1640, 4294901760
      %1642 = vmatpush.msra.mxu0 %v1641
      %v1643 = vand.u32 %v685, 4294901760
      %v1644 = vsub.f32 %v685, %v1643
      %v1645 = vand.u32 %v1644, 4294901760
      %v1646 = vsub.f32 %v1644, %v1645
      %v1647 = vand.u32 %v1646, 4294901760
      %1648 = vmatpush.msra.mxu0 %v1647
      %v1649 = vand.u32 %v684, 4294901760
      %v1650 = vsub.f32 %v684, %v1649
      %v1651 = vand.u32 %v1650, 4294901760
      %v1652 = vsub.f32 %v1650, %v1651
      %v1653 = vand.u32 %v1652, 4294901760
      %1654 = vmatpush.msra.mxu0 %v1653
      %v1655 = vand.u32 %v683, 4294901760
      %v1656 = vsub.f32 %v683, %v1655
      %v1657 = vand.u32 %v1656, 4294901760
      %v1658 = vsub.f32 %v1656, %v1657
      %v1659 = vand.u32 %v1658, 4294901760
      %1660 = vmatpush.msra.mxu0 %v1659
      %v1661 = vand.u32 %v682, 4294901760
      %v1662 = vsub.f32 %v682, %v1661
      %v1663 = vand.u32 %v1662, 4294901760
      %v1664 = vsub.f32 %v1662, %v1663
      %v1665 = vand.u32 %v1664, 4294901760
      %1666 = vmatpush.msra.mxu0 %v1665
      %v1667 = vand.u32 %v681, 4294901760
      %v1668 = vsub.f32 %v681, %v1667
      %v1669 = vand.u32 %v1668, 4294901760
      %v1670 = vsub.f32 %v1668, %v1669
      %v1671 = vand.u32 %v1670, 4294901760
      %1672 = vmatpush.msra.mxu0 %v1671
      %v1673 = vand.u32 %v680, 4294901760
      %v1674 = vsub.f32 %v680, %v1673
      %v1675 = vand.u32 %v1674, 4294901760
      %v1676 = vsub.f32 %v1674, %v1675
      %v1677 = vand.u32 %v1676, 4294901760
      %1678 = vmatpush.msra.mxu0 %v1677
      %v1679 = vand.u32 %v679, 4294901760
      %v1680 = vsub.f32 %v679, %v1679
      %v1681 = vand.u32 %v1680, 4294901760
      %v1682 = vsub.f32 %v1680, %v1681
      %v1683 = vand.u32 %v1682, 4294901760
      %1684 = vmatpush.msra.mxu0 %v1683
      %v1685 = vand.u32 %v662, 4294901760
      %1686 = vmatmul.f32.gmra.mxu0 %v1685
      %v1687 = vpop.f32.mrf.mxu0
      %v1688 = vadd.f32 %v1587, %v1687
      %1689 = vdwg.mxu0
      %v1690 = vand.u32 %v694, 4294901760
      %v1691 = vsub.f32 %v694, %v1690
      %1692 = vmatpush.msra.mxu0 %v1691
      %v1693 = vand.u32 %v693, 4294901760
      %v1694 = vsub.f32 %v693, %v1693
      %1695 = vmatpush.msra.mxu0 %v1694
      %v1696 = vand.u32 %v692, 4294901760
      %v1697 = vsub.f32 %v692, %v1696
      %1698 = vmatpush.msra.mxu0 %v1697
      %v1699 = vand.u32 %v691, 4294901760
      %v1700 = vsub.f32 %v691, %v1699
      %1701 = vmatpush.msra.mxu0 %v1700
      %v1702 = vand.u32 %v690, 4294901760
      %v1703 = vsub.f32 %v690, %v1702
      %1704 = vmatpush.msra.mxu0 %v1703
      %v1705 = vand.u32 %v689, 4294901760
      %v1706 = vsub.f32 %v689, %v1705
      %1707 = vmatpush.msra.mxu0 %v1706
      %v1708 = vand.u32 %v688, 4294901760
      %v1709 = vsub.f32 %v688, %v1708
      %1710 = vmatpush.msra.mxu0 %v1709
      %v1711 = vand.u32 %v687, 4294901760
      %v1712 = vsub.f32 %v687, %v1711
      %1713 = vmatpush.msra.mxu0 %v1712
      %v1714 = vand.u32 %v686, 4294901760
      %v1715 = vsub.f32 %v686, %v1714
      %1716 = vmatpush.msra.mxu0 %v1715
      %v1717 = vand.u32 %v685, 4294901760
      %v1718 = vsub.f32 %v685, %v1717
      %1719 = vmatpush.msra.mxu0 %v1718
      %v1720 = vand.u32 %v684, 4294901760
      %v1721 = vsub.f32 %v684, %v1720
      %1722 = vmatpush.msra.mxu0 %v1721
      %v1723 = vand.u32 %v683, 4294901760
      %v1724 = vsub.f32 %v683, %v1723
      %1725 = vmatpush.msra.mxu0 %v1724
      %v1726 = vand.u32 %v682, 4294901760
      %v1727 = vsub.f32 %v682, %v1726
      %1728 = vmatpush.msra.mxu0 %v1727
      %v1729 = vand.u32 %v681, 4294901760
      %v1730 = vsub.f32 %v681, %v1729
      %1731 = vmatpush.msra.mxu0 %v1730
      %v1732 = vand.u32 %v680, 4294901760
      %v1733 = vsub.f32 %v680, %v1732
      %1734 = vmatpush.msra.mxu0 %v1733
      %v1735 = vand.u32 %v679, 4294901760
      %v1736 = vsub.f32 %v679, %v1735
      %1737 = vmatpush.msra.mxu0 %v1736
      %v1738 = vand.u32 %v662, 4294901760
      %v1739 = vsub.f32 %v662, %v1738
      %1740 = vmatmul.f32.gmra.mxu0 %v1739
      %v1741 = vpop.f32.mrf.mxu0
      %v1742 = vadd.f32 %v1688, %v1741
      %1743 = vdwg.mxu0
      %v1744 = vand.u32 %v694, 4294901760
      %1745 = vmatpush.msra.mxu0 %v1744
      %v1746 = vand.u32 %v693, 4294901760
      %1747 = vmatpush.msra.mxu0 %v1746
      %v1748 = vand.u32 %v692, 4294901760
      %1749 = vmatpush.msra.mxu0 %v1748
      %v1750 = vand.u32 %v691, 4294901760
      %1751 = vmatpush.msra.mxu0 %v1750
      %v1752 = vand.u32 %v690, 4294901760
      %1753 = vmatpush.msra.mxu0 %v1752
      %v1754 = vand.u32 %v689, 4294901760
      %1755 = vmatpush.msra.mxu0 %v1754
      %v1756 = vand.u32 %v688, 4294901760
      %1757 = vmatpush.msra.mxu0 %v1756
      %v1758 = vand.u32 %v687, 4294901760
      %1759 = vmatpush.msra.mxu0 %v1758
      %v1760 = vand.u32 %v686, 4294901760
      %1761 = vmatpush.msra.mxu0 %v1760
      %v1762 = vand.u32 %v685, 4294901760
      %1763 = vmatpush.msra.mxu0 %v1762
      %v1764 = vand.u32 %v684, 4294901760
      %1765 = vmatpush.msra.mxu0 %v1764
      %v1766 = vand.u32 %v683, 4294901760
      %1767 = vmatpush.msra.mxu0 %v1766
      %v1768 = vand.u32 %v682, 4294901760
      %1769 = vmatpush.msra.mxu0 %v1768
      %v1770 = vand.u32 %v681, 4294901760
      %1771 = vmatpush.msra.mxu0 %v1770
      %v1772 = vand.u32 %v680, 4294901760
      %1773 = vmatpush.msra.mxu0 %v1772
      %v1774 = vand.u32 %v679, 4294901760
      %1775 = vmatpush.msra.mxu0 %v1774
      %v1776 = vand.u32 %v662, 4294901760
      %v1777 = vsub.f32 %v662, %v1776
      %v1778 = vand.u32 %v1777, 4294901760
      %1779 = vmatmul.f32.gmra.mxu0 %v1778
      %v1780 = vpop.f32.mrf.mxu0
      %v1781 = vadd.f32 %v1742, %v1780
      %1782 = vdwg.mxu0
      %v1783 = vand.u32 %v694, 4294901760
      %v1784 = vsub.f32 %v694, %v1783
      %v1785 = vand.u32 %v1784, 4294901760
      %1786 = vmatpush.msra.mxu0 %v1785
      %v1787 = vand.u32 %v693, 4294901760
      %v1788 = vsub.f32 %v693, %v1787
      %v1789 = vand.u32 %v1788, 4294901760
      %1790 = vmatpush.msra.mxu0 %v1789
      %v1791 = vand.u32 %v692, 4294901760
      %v1792 = vsub.f32 %v692, %v1791
      %v1793 = vand.u32 %v1792, 4294901760
      %1794 = vmatpush.msra.mxu0 %v1793
      %v1795 = vand.u32 %v691, 4294901760
      %v1796 = vsub.f32 %v691, %v1795
      %v1797 = vand.u32 %v1796, 4294901760
      %1798 = vmatpush.msra.mxu0 %v1797
      %v1799 = vand.u32 %v690, 4294901760
      %v1800 = vsub.f32 %v690, %v1799
      %v1801 = vand.u32 %v1800, 4294901760
      %1802 = vmatpush.msra.mxu0 %v1801
      %v1803 = vand.u32 %v689, 4294901760
      %v1804 = vsub.f32 %v689, %v1803
      %v1805 = vand.u32 %v1804, 4294901760
      %1806 = vmatpush.msra.mxu0 %v1805
      %v1807 = vand.u32 %v688, 4294901760
      %v1808 = vsub.f32 %v688, %v1807
      %v1809 = vand.u32 %v1808, 4294901760
      %1810 = vmatpush.msra.mxu0 %v1809
      %v1811 = vand.u32 %v687, 4294901760
      %v1812 = vsub.f32 %v687, %v1811
      %v1813 = vand.u32 %v1812, 4294901760
      %1814 = vmatpush.msra.mxu0 %v1813
      %v1815 = vand.u32 %v686, 4294901760
      %v1816 = vsub.f32 %v686, %v1815
      %v1817 = vand.u32 %v1816, 4294901760
      %1818 = vmatpush.msra.mxu0 %v1817
      %v1819 = vand.u32 %v685, 4294901760
      %v1820 = vsub.f32 %v685, %v1819
      %v1821 = vand.u32 %v1820, 4294901760
      %1822 = vmatpush.msra.mxu0 %v1821
      %v1823 = vand.u32 %v684, 4294901760
      %v1824 = vsub.f32 %v684, %v1823
      %v1825 = vand.u32 %v1824, 4294901760
      %1826 = vmatpush.msra.mxu0 %v1825
      %v1827 = vand.u32 %v683, 4294901760
      %v1828 = vsub.f32 %v683, %v1827
      %v1829 = vand.u32 %v1828, 4294901760
      %1830 = vmatpush.msra.mxu0 %v1829
      %v1831 = vand.u32 %v682, 4294901760
      %v1832 = vsub.f32 %v682, %v1831
      %v1833 = vand.u32 %v1832, 4294901760
      %1834 = vmatpush.msra.mxu0 %v1833
      %v1835 = vand.u32 %v681, 4294901760
      %v1836 = vsub.f32 %v681, %v1835
      %v1837 = vand.u32 %v1836, 4294901760
      %1838 = vmatpush.msra.mxu0 %v1837
      %v1839 = vand.u32 %v680, 4294901760
      %v1840 = vsub.f32 %v680, %v1839
      %v1841 = vand.u32 %v1840, 4294901760
      %1842 = vmatpush.msra.mxu0 %v1841
      %v1843 = vand.u32 %v679, 4294901760
      %v1844 = vsub.f32 %v679, %v1843
      %v1845 = vand.u32 %v1844, 4294901760
      %1846 = vmatpush.msra.mxu0 %v1845
      %v1847 = vand.u32 %v662, 4294901760
      %1848 = vmatmul.f32.gmra.mxu0 %v1847
      %v1849 = vpop.f32.mrf.mxu0
      %v1850 = vadd.f32 %v1781, %v1849
      %1851 = vdwg.mxu0
      %v1852 = vand.u32 %v694, 4294901760
      %1853 = vmatpush.msra.mxu0 %v1852
      %v1854 = vand.u32 %v693, 4294901760
      %1855 = vmatpush.msra.mxu0 %v1854
      %v1856 = vand.u32 %v692, 4294901760
      %1857 = vmatpush.msra.mxu0 %v1856
      %v1858 = vand.u32 %v691, 4294901760
      %1859 = vmatpush.msra.mxu0 %v1858
      %v1860 = vand.u32 %v690, 4294901760
      %1861 = vmatpush.msra.mxu0 %v1860
      %v1862 = vand.u32 %v689, 4294901760
      %1863 = vmatpush.msra.mxu0 %v1862
      %v1864 = vand.u32 %v688, 4294901760
      %1865 = vmatpush.msra.mxu0 %v1864
      %v1866 = vand.u32 %v687, 4294901760
      %1867 = vmatpush.msra.mxu0 %v1866
      %v1868 = vand.u32 %v686, 4294901760
      %1869 = vmatpush.msra.mxu0 %v1868
      %v1870 = vand.u32 %v685, 4294901760
      %1871 = vmatpush.msra.mxu0 %v1870
      %v1872 = vand.u32 %v684, 4294901760
      %1873 = vmatpush.msra.mxu0 %v1872
      %v1874 = vand.u32 %v683, 4294901760
      %1875 = vmatpush.msra.mxu0 %v1874
      %v1876 = vand.u32 %v682, 4294901760
      %1877 = vmatpush.msra.mxu0 %v1876
      %v1878 = vand.u32 %v681, 4294901760
      %1879 = vmatpush.msra.mxu0 %v1878
      %v1880 = vand.u32 %v680, 4294901760
      %1881 = vmatpush.msra.mxu0 %v1880
      %v1882 = vand.u32 %v679, 4294901760
      %1883 = vmatpush.msra.mxu0 %v1882
      %v1884 = vand.u32 %v662, 4294901760
      %1885 = vmatmul.f32.gmra.mxu0 %v1884
      %v1886 = vpop.f32.mrf.mxu0
      %v1887 = vadd.f32 %v1850, %v1886
      %1888 = vdwg.mxu0
      %v1889 = vand.u32 %v710, 4294901760
      %1890 = vmatpush.msra.mxu0 %v1889
      %v1891 = vand.u32 %v709, 4294901760
      %1892 = vmatpush.msra.mxu0 %v1891
      %v1893 = vand.u32 %v708, 4294901760
      %1894 = vmatpush.msra.mxu0 %v1893
      %v1895 = vand.u32 %v707, 4294901760
      %1896 = vmatpush.msra.mxu0 %v1895
      %v1897 = vand.u32 %v706, 4294901760
      %1898 = vmatpush.msra.mxu0 %v1897
      %v1899 = vand.u32 %v705, 4294901760
      %1900 = vmatpush.msra.mxu0 %v1899
      %v1901 = vand.u32 %v704, 4294901760
      %1902 = vmatpush.msra.mxu0 %v1901
      %v1903 = vand.u32 %v703, 4294901760
      %1904 = vmatpush.msra.mxu0 %v1903
      %v1905 = vand.u32 %v702, 4294901760
      %1906 = vmatpush.msra.mxu0 %v1905
      %v1907 = vand.u32 %v701, 4294901760
      %1908 = vmatpush.msra.mxu0 %v1907
      %v1909 = vand.u32 %v700, 4294901760
      %1910 = vmatpush.msra.mxu0 %v1909
      %v1911 = vand.u32 %v699, 4294901760
      %1912 = vmatpush.msra.mxu0 %v1911
      %v1913 = vand.u32 %v698, 4294901760
      %1914 = vmatpush.msra.mxu0 %v1913
      %v1915 = vand.u32 %v697, 4294901760
      %1916 = vmatpush.msra.mxu0 %v1915
      %v1917 = vand.u32 %v696, 4294901760
      %1918 = vmatpush.msra.mxu0 %v1917
      %v1919 = vand.u32 %v695, 4294901760
      %1920 = vmatpush.msra.mxu0 %v1919
      %v1921 = vand.u32 %v669, 4294901760
      %v1922 = vsub.f32 %v669, %v1921
      %v1923 = vand.u32 %v1922, 4294901760
      %v1924 = vsub.f32 %v1922, %v1923
      %v1925 = vand.u32 %v1924, 4294901760
      %1926 = vmatmul.f32.gmra.mxu0 %v1925
      %v1927 = vpop.f32.mrf.mxu0
      %v1928 = vadd.f32 %v1887, %v1927
      %1929 = vdwg.mxu0
      %v1930 = vand.u32 %v710, 4294901760
      %v1931 = vsub.f32 %v710, %v1930
      %v1932 = vand.u32 %v1931, 4294901760
      %v1933 = vsub.f32 %v1931, %v1932
      %v1934 = vand.u32 %v1933, 4294901760
      %1935 = vmatpush.msra.mxu0 %v1934
      %v1936 = vand.u32 %v709, 4294901760
      %v1937 = vsub.f32 %v709, %v1936
      %v1938 = vand.u32 %v1937, 4294901760
      %v1939 = vsub.f32 %v1937, %v1938
      %v1940 = vand.u32 %v1939, 4294901760
      %1941 = vmatpush.msra.mxu0 %v1940
      %v1942 = vand.u32 %v708, 4294901760
      %v1943 = vsub.f32 %v708, %v1942
      %v1944 = vand.u32 %v1943, 4294901760
      %v1945 = vsub.f32 %v1943, %v1944
      %v1946 = vand.u32 %v1945, 4294901760
      %1947 = vmatpush.msra.mxu0 %v1946
      %v1948 = vand.u32 %v707, 4294901760
      %v1949 = vsub.f32 %v707, %v1948
      %v1950 = vand.u32 %v1949, 4294901760
      %v1951 = vsub.f32 %v1949, %v1950
      %v1952 = vand.u32 %v1951, 4294901760
      %1953 = vmatpush.msra.mxu0 %v1952
      %v1954 = vand.u32 %v706, 4294901760
      %v1955 = vsub.f32 %v706, %v1954
      %v1956 = vand.u32 %v1955, 4294901760
      %v1957 = vsub.f32 %v1955, %v1956
      %v1958 = vand.u32 %v1957, 4294901760
      %1959 = vmatpush.msra.mxu0 %v1958
      %v1960 = vand.u32 %v705, 4294901760
      %v1961 = vsub.f32 %v705, %v1960
      %v1962 = vand.u32 %v1961, 4294901760
      %v1963 = vsub.f32 %v1961, %v1962
      %v1964 = vand.u32 %v1963, 4294901760
      %1965 = vmatpush.msra.mxu0 %v1964
      %v1966 = vand.u32 %v704, 4294901760
      %v1967 = vsub.f32 %v704, %v1966
      %v1968 = vand.u32 %v1967, 4294901760
      %v1969 = vsub.f32 %v1967, %v1968
      %v1970 = vand.u32 %v1969, 4294901760
      %1971 = vmatpush.msra.mxu0 %v1970
      %v1972 = vand.u32 %v703, 4294901760
      %v1973 = vsub.f32 %v703, %v1972
      %v1974 = vand.u32 %v1973, 4294901760
      %v1975 = vsub.f32 %v1973, %v1974
      %v1976 = vand.u32 %v1975, 4294901760
      %1977 = vmatpush.msra.mxu0 %v1976
      %v1978 = vand.u32 %v702, 4294901760
      %v1979 = vsub.f32 %v702, %v1978
      %v1980 = vand.u32 %v1979, 4294901760
      %v1981 = vsub.f32 %v1979, %v1980
      %v1982 = vand.u32 %v1981, 4294901760
      %1983 = vmatpush.msra.mxu0 %v1982
      %v1984 = vand.u32 %v701, 4294901760
      %v1985 = vsub.f32 %v701, %v1984
      %v1986 = vand.u32 %v1985, 4294901760
      %v1987 = vsub.f32 %v1985, %v1986
      %v1988 = vand.u32 %v1987, 4294901760
      %1989 = vmatpush.msra.mxu0 %v1988
      %v1990 = vand.u32 %v700, 4294901760
      %v1991 = vsub.f32 %v700, %v1990
      %v1992 = vand.u32 %v1991, 4294901760
      %v1993 = vsub.f32 %v1991, %v1992
      %v1994 = vand.u32 %v1993, 4294901760
      %1995 = vmatpush.msra.mxu0 %v1994
      %v1996 = vand.u32 %v699, 4294901760
      %v1997 = vsub.f32 %v699, %v1996
      %v1998 = vand.u32 %v1997, 4294901760
      %v1999 = vsub.f32 %v1997, %v1998
      %v2000 = vand.u32 %v1999, 4294901760
      %2001 = vmatpush.msra.mxu0 %v2000
      %v2002 = vand.u32 %v698, 4294901760
      %v2003 = vsub.f32 %v698, %v2002
      %v2004 = vand.u32 %v2003, 4294901760
      %v2005 = vsub.f32 %v2003, %v2004
      %v2006 = vand.u32 %v2005, 4294901760
      %2007 = vmatpush.msra.mxu0 %v2006
      %v2008 = vand.u32 %v697, 4294901760
      %v2009 = vsub.f32 %v697, %v2008
      %v2010 = vand.u32 %v2009, 4294901760
      %v2011 = vsub.f32 %v2009, %v2010
      %v2012 = vand.u32 %v2011, 4294901760
      %2013 = vmatpush.msra.mxu0 %v2012
      %v2014 = vand.u32 %v696, 4294901760
      %v2015 = vsub.f32 %v696, %v2014
      %v2016 = vand.u32 %v2015, 4294901760
      %v2017 = vsub.f32 %v2015, %v2016
      %v2018 = vand.u32 %v2017, 4294901760
      %2019 = vmatpush.msra.mxu0 %v2018
      %v2020 = vand.u32 %v695, 4294901760
      %v2021 = vsub.f32 %v695, %v2020
      %v2022 = vand.u32 %v2021, 4294901760
      %v2023 = vsub.f32 %v2021, %v2022
      %v2024 = vand.u32 %v2023, 4294901760
      %2025 = vmatpush.msra.mxu0 %v2024
      %v2026 = vand.u32 %v669, 4294901760
      %2027 = vmatmul.f32.gmra.mxu0 %v2026
      %v2028 = vpop.f32.mrf.mxu0
      %v2029 = vadd.f32 %v1928, %v2028
      %2030 = vdwg.mxu0
      %v2031 = vand.u32 %v710, 4294901760
      %v2032 = vsub.f32 %v710, %v2031
      %2033 = vmatpush.msra.mxu0 %v2032
      %v2034 = vand.u32 %v709, 4294901760
      %v2035 = vsub.f32 %v709, %v2034
      %2036 = vmatpush.msra.mxu0 %v2035
      %v2037 = vand.u32 %v708, 4294901760
      %v2038 = vsub.f32 %v708, %v2037
      %2039 = vmatpush.msra.mxu0 %v2038
      %v2040 = vand.u32 %v707, 4294901760
      %v2041 = vsub.f32 %v707, %v2040
      %2042 = vmatpush.msra.mxu0 %v2041
      %v2043 = vand.u32 %v706, 4294901760
      %v2044 = vsub.f32 %v706, %v2043
      %2045 = vmatpush.msra.mxu0 %v2044
      %v2046 = vand.u32 %v705, 4294901760
      %v2047 = vsub.f32 %v705, %v2046
      %2048 = vmatpush.msra.mxu0 %v2047
      %v2049 = vand.u32 %v704, 4294901760
      %v2050 = vsub.f32 %v704, %v2049
      %2051 = vmatpush.msra.mxu0 %v2050
      %v2052 = vand.u32 %v703, 4294901760
      %v2053 = vsub.f32 %v703, %v2052
      %2054 = vmatpush.msra.mxu0 %v2053
      %v2055 = vand.u32 %v702, 4294901760
      %v2056 = vsub.f32 %v702, %v2055
      %2057 = vmatpush.msra.mxu0 %v2056
      %v2058 = vand.u32 %v701, 4294901760
      %v2059 = vsub.f32 %v701, %v2058
      %2060 = vmatpush.msra.mxu0 %v2059
      %v2061 = vand.u32 %v700, 4294901760
      %v2062 = vsub.f32 %v700, %v2061
      %2063 = vmatpush.msra.mxu0 %v2062
      %v2064 = vand.u32 %v699, 4294901760
      %v2065 = vsub.f32 %v699, %v2064
      %2066 = vmatpush.msra.mxu0 %v2065
      %v2067 = vand.u32 %v698, 4294901760
      %v2068 = vsub.f32 %v698, %v2067
      %2069 = vmatpush.msra.mxu0 %v2068
      %v2070 = vand.u32 %v697, 4294901760
      %v2071 = vsub.f32 %v697, %v2070
      %2072 = vmatpush.msra.mxu0 %v2071
      %v2073 = vand.u32 %v696, 4294901760
      %v2074 = vsub.f32 %v696, %v2073
      %2075 = vmatpush.msra.mxu0 %v2074
      %v2076 = vand.u32 %v695, 4294901760
      %v2077 = vsub.f32 %v695, %v2076
      %2078 = vmatpush.msra.mxu0 %v2077
      %v2079 = vand.u32 %v669, 4294901760
      %v2080 = vsub.f32 %v669, %v2079
      %2081 = vmatmul.f32.gmra.mxu0 %v2080
      %v2082 = vpop.f32.mrf.mxu0
      %v2083 = vadd.f32 %v2029, %v2082
      %2084 = vdwg.mxu0
      %v2085 = vand.u32 %v710, 4294901760
      %2086 = vmatpush.msra.mxu0 %v2085
      %v2087 = vand.u32 %v709, 4294901760
      %2088 = vmatpush.msra.mxu0 %v2087
      %v2089 = vand.u32 %v708, 4294901760
      %2090 = vmatpush.msra.mxu0 %v2089
      %v2091 = vand.u32 %v707, 4294901760
      %2092 = vmatpush.msra.mxu0 %v2091
      %v2093 = vand.u32 %v706, 4294901760
      %2094 = vmatpush.msra.mxu0 %v2093
      %v2095 = vand.u32 %v705, 4294901760
      %2096 = vmatpush.msra.mxu0 %v2095
      %v2097 = vand.u32 %v704, 4294901760
      %2098 = vmatpush.msra.mxu0 %v2097
      %v2099 = vand.u32 %v703, 4294901760
      %2100 = vmatpush.msra.mxu0 %v2099
      %v2101 = vand.u32 %v702, 4294901760
      %2102 = vmatpush.msra.mxu0 %v2101
      %v2103 = vand.u32 %v701, 4294901760
      %2104 = vmatpush.msra.mxu0 %v2103
      %v2105 = vand.u32 %v700, 4294901760
      %2106 = vmatpush.msra.mxu0 %v2105
      %v2107 = vand.u32 %v699, 4294901760
      %2108 = vmatpush.msra.mxu0 %v2107
      %v2109 = vand.u32 %v698, 4294901760
      %2110 = vmatpush.msra.mxu0 %v2109
      %v2111 = vand.u32 %v697, 4294901760
      %2112 = vmatpush.msra.mxu0 %v2111
      %v2113 = vand.u32 %v696, 4294901760
      %2114 = vmatpush.msra.mxu0 %v2113
      %v2115 = vand.u32 %v695, 4294901760
      %2116 = vmatpush.msra.mxu0 %v2115
      %v2117 = vand.u32 %v669, 4294901760
      %v2118 = vsub.f32 %v669, %v2117
      %v2119 = vand.u32 %v2118, 4294901760
      %2120 = vmatmul.f32.gmra.mxu0 %v2119
      %v2121 = vpop.f32.mrf.mxu0
      %v2122 = vadd.f32 %v2083, %v2121
      %2123 = vdwg.mxu0
      %v2124 = vand.u32 %v710, 4294901760
      %v2125 = vsub.f32 %v710, %v2124
      %v2126 = vand.u32 %v2125, 4294901760
      %2127 = vmatpush.msra.mxu0 %v2126
      %v2128 = vand.u32 %v709, 4294901760
      %v2129 = vsub.f32 %v709, %v2128
      %v2130 = vand.u32 %v2129, 4294901760
      %2131 = vmatpush.msra.mxu0 %v2130
      %v2132 = vand.u32 %v708, 4294901760
      %v2133 = vsub.f32 %v708, %v2132
      %v2134 = vand.u32 %v2133, 4294901760
      %2135 = vmatpush.msra.mxu0 %v2134
      %v2136 = vand.u32 %v707, 4294901760
      %v2137 = vsub.f32 %v707, %v2136
      %v2138 = vand.u32 %v2137, 4294901760
      %2139 = vmatpush.msra.mxu0 %v2138
      %v2140 = vand.u32 %v706, 4294901760
      %v2141 = vsub.f32 %v706, %v2140
      %v2142 = vand.u32 %v2141, 4294901760
      %2143 = vmatpush.msra.mxu0 %v2142
      %v2144 = vand.u32 %v705, 4294901760
      %v2145 = vsub.f32 %v705, %v2144
      %v2146 = vand.u32 %v2145, 4294901760
      %2147 = vmatpush.msra.mxu0 %v2146
      %v2148 = vand.u32 %v704, 4294901760
      %v2149 = vsub.f32 %v704, %v2148
      %v2150 = vand.u32 %v2149, 4294901760
      %2151 = vmatpush.msra.mxu0 %v2150
      %v2152 = vand.u32 %v703, 4294901760
      %v2153 = vsub.f32 %v703, %v2152
      %v2154 = vand.u32 %v2153, 4294901760
      %2155 = vmatpush.msra.mxu0 %v2154
      %v2156 = vand.u32 %v702, 4294901760
      %v2157 = vsub.f32 %v702, %v2156
      %v2158 = vand.u32 %v2157, 4294901760
      %2159 = vmatpush.msra.mxu0 %v2158
      %v2160 = vand.u32 %v701, 4294901760
      %v2161 = vsub.f32 %v701, %v2160
      %v2162 = vand.u32 %v2161, 4294901760
      %2163 = vmatpush.msra.mxu0 %v2162
      %v2164 = vand.u32 %v700, 4294901760
      %v2165 = vsub.f32 %v700, %v2164
      %v2166 = vand.u32 %v2165, 4294901760
      %2167 = vmatpush.msra.mxu0 %v2166
      %v2168 = vand.u32 %v699, 4294901760
      %v2169 = vsub.f32 %v699, %v2168
      %v2170 = vand.u32 %v2169, 4294901760
      %2171 = vmatpush.msra.mxu0 %v2170
      %v2172 = vand.u32 %v698, 4294901760
      %v2173 = vsub.f32 %v698, %v2172
      %v2174 = vand.u32 %v2173, 4294901760
      %2175 = vmatpush.msra.mxu0 %v2174
      %v2176 = vand.u32 %v697, 4294901760
      %v2177 = vsub.f32 %v697, %v2176
      %v2178 = vand.u32 %v2177, 4294901760
      %2179 = vmatpush.msra.mxu0 %v2178
      %v2180 = vand.u32 %v696, 4294901760
      %v2181 = vsub.f32 %v696, %v2180
      %v2182 = vand.u32 %v2181, 4294901760
      %2183 = vmatpush.msra.mxu0 %v2182
      %v2184 = vand.u32 %v695, 4294901760
      %v2185 = vsub.f32 %v695, %v2184
      %v2186 = vand.u32 %v2185, 4294901760
      %2187 = vmatpush.msra.mxu0 %v2186
      %v2188 = vand.u32 %v669, 4294901760
      %2189 = vmatmul.f32.gmra.mxu0 %v2188
      %v2190 = vpop.f32.mrf.mxu0
      %v2191 = vadd.f32 %v2122, %v2190
      %2192 = vdwg.mxu0
      %v2193 = vand.u32 %v710, 4294901760
      %2194 = vmatpush.msra.mxu0 %v2193
      %v2195 = vand.u32 %v709, 4294901760
      %2196 = vmatpush.msra.mxu0 %v2195
      %v2197 = vand.u32 %v708, 4294901760
      %2198 = vmatpush.msra.mxu0 %v2197
      %v2199 = vand.u32 %v707, 4294901760
      %2200 = vmatpush.msra.mxu0 %v2199
      %v2201 = vand.u32 %v706, 4294901760
      %2202 = vmatpush.msra.mxu0 %v2201
      %v2203 = vand.u32 %v705, 4294901760
      %2204 = vmatpush.msra.mxu0 %v2203
      %v2205 = vand.u32 %v704, 4294901760
      %2206 = vmatpush.msra.mxu0 %v2205
      %v2207 = vand.u32 %v703, 4294901760
      %2208 = vmatpush.msra.mxu0 %v2207
      %v2209 = vand.u32 %v702, 4294901760
      %2210 = vmatpush.msra.mxu0 %v2209
      %v2211 = vand.u32 %v701, 4294901760
      %2212 = vmatpush.msra.mxu0 %v2211
      %v2213 = vand.u32 %v700, 4294901760
      %2214 = vmatpush.msra.mxu0 %v2213
      %v2215 = vand.u32 %v699, 4294901760
      %2216 = vmatpush.msra.mxu0 %v2215
      %v2217 = vand.u32 %v698, 4294901760
      %2218 = vmatpush.msra.mxu0 %v2217
      %v2219 = vand.u32 %v697, 4294901760
      %2220 = vmatpush.msra.mxu0 %v2219
      %v2221 = vand.u32 %v696, 4294901760
      %2222 = vmatpush.msra.mxu0 %v2221
      %v2223 = vand.u32 %v695, 4294901760
      %2224 = vmatpush.msra.mxu0 %v2223
      %v2225 = vand.u32 %v669, 4294901760
      %2226 = vmatmul.f32.gmra.mxu0 %v2225
      %v2227 = vpop.f32.mrf.mxu0
      %v2228 = vadd.f32 %v2191, %v2227
      %2229 = vdwg.mxu0
      %2230 = vmatpush.msra.mxu0 0.0
      %2231 = vmatpush.msra.mxu0 0.0
      %2232 = vmatpush.msra.mxu0 0.0
      %2233 = vmatpush.msra.mxu0 0.0
      %2234 = vmatpush.msra.mxu0 0.0
      %2235 = vmatpush.msra.mxu0 0.0
      %2236 = vmatpush.msra.mxu0 0.0
      %2237 = vmatpush.msra.mxu0 0.0
      %2238 = vmatpush.msra.mxu0 0.0
      %2239 = vmatpush.msra.mxu0 0.0
      %2240 = vmatpush.msra.mxu0 0.0
      %2241 = vmatpush.msra.mxu0 0.0
      %2242 = vmatpush.msra.mxu0 0.0
      %2243 = vmatpush.msra.mxu0 0.0
      %2244 = vmatpush.msra.mxu0 0.0
      %v2245 = vand.u32 %v711, 4294901760
      %2246 = vmatpush.msra.mxu0 %v2245
      %v2247 = vand.u32 %v1546, 4294901760
      %v2248 = vsub.f32 %v1546, %v2247
      %v2249 = vand.u32 %v2248, 4294901760
      %v2250 = vsub.f32 %v2248, %v2249
      %v2251 = vand.u32 %v2250, 4294901760
      %2252 = vmatmul.f32.gmra.mxu0 %v2251
      %v2253 = vpop.f32.mrf.mxu0
      %v2254 = vadd.f32 %v2228, %v2253
      %2255 = vdwg.mxu0
      %2256 = vmatpush.msra.mxu0 0.0
      %2257 = vmatpush.msra.mxu0 0.0
      %2258 = vmatpush.msra.mxu0 0.0
      %2259 = vmatpush.msra.mxu0 0.0
      %2260 = vmatpush.msra.mxu0 0.0
      %2261 = vmatpush.msra.mxu0 0.0
      %2262 = vmatpush.msra.mxu0 0.0
      %2263 = vmatpush.msra.mxu0 0.0
      %2264 = vmatpush.msra.mxu0 0.0
      %2265 = vmatpush.msra.mxu0 0.0
      %2266 = vmatpush.msra.mxu0 0.0
      %2267 = vmatpush.msra.mxu0 0.0
      %2268 = vmatpush.msra.mxu0 0.0
      %2269 = vmatpush.msra.mxu0 0.0
      %2270 = vmatpush.msra.mxu0 0.0
      %v2271 = vand.u32 %v711, 4294901760
      %v2272 = vsub.f32 %v711, %v2271
      %v2273 = vand.u32 %v2272, 4294901760
      %v2274 = vsub.f32 %v2272, %v2273
      %v2275 = vand.u32 %v2274, 4294901760
      %2276 = vmatpush.msra.mxu0 %v2275
      %v2277 = vand.u32 %v1546, 4294901760
      %2278 = vmatmul.f32.gmra.mxu0 %v2277
      %v2279 = vpop.f32.mrf.mxu0
      %v2280 = vadd.f32 %v2254, %v2279
      %2281 = vdwg.mxu0
      %2282 = vmatpush.msra.mxu0 0.0
      %2283 = vmatpush.msra.mxu0 0.0
      %2284 = vmatpush.msra.mxu0 0.0
      %2285 = vmatpush.msra.mxu0 0.0
      %2286 = vmatpush.msra.mxu0 0.0
      %2287 = vmatpush.msra.mxu0 0.0
      %2288 = vmatpush.msra.mxu0 0.0
      %2289 = vmatpush.msra.mxu0 0.0
      %2290 = vmatpush.msra.mxu0 0.0
      %2291 = vmatpush.msra.mxu0 0.0
      %2292 = vmatpush.msra.mxu0 0.0
      %2293 = vmatpush.msra.mxu0 0.0
      %2294 = vmatpush.msra.mxu0 0.0
      %2295 = vmatpush.msra.mxu0 0.0
      %2296 = vmatpush.msra.mxu0 0.0
      %v2297 = vand.u32 %v711, 4294901760
      %v2298 = vsub.f32 %v711, %v2297
      %2299 = vmatpush.msra.mxu0 %v2298
      %v2300 = vand.u32 %v1546, 4294901760
      %v2301 = vsub.f32 %v1546, %v2300
      %2302 = vmatmul.f32.gmra.mxu0 %v2301
      %v2303 = vpop.f32.mrf.mxu0
      %v2304 = vadd.f32 %v2280, %v2303
      %2305 = vdwg.mxu0
      %2306 = vmatpush.msra.mxu0 0.0
      %2307 = vmatpush.msra.mxu0 0.0
      %2308 = vmatpush.msra.mxu0 0.0
      %2309 = vmatpush.msra.mxu0 0.0
      %2310 = vmatpush.msra.mxu0 0.0
      %2311 = vmatpush.msra.mxu0 0.0
      %2312 = vmatpush.msra.mxu0 0.0
      %2313 = vmatpush.msra.mxu0 0.0
      %2314 = vmatpush.msra.mxu0 0.0
      %2315 = vmatpush.msra.mxu0 0.0
      %2316 = vmatpush.msra.mxu0 0.0
      %2317 = vmatpush.msra.mxu0 0.0
      %2318 = vmatpush.msra.mxu0 0.0
      %2319 = vmatpush.msra.mxu0 0.0
      %2320 = vmatpush.msra.mxu0 0.0
      %v2321 = vand.u32 %v711, 4294901760
      %2322 = vmatpush.msra.mxu0 %v2321
      %v2323 = vand.u32 %v1546, 4294901760
      %v2324 = vsub.f32 %v1546, %v2323
      %v2325 = vand.u32 %v2324, 4294901760
      %2326 = vmatmul.f32.gmra.mxu0 %v2325
      %v2327 = vpop.f32.mrf.mxu0
      %v2328 = vadd.f32 %v2304, %v2327
      %2329 = vdwg.mxu0
      %2330 = vmatpush.msra.mxu0 0.0
      %2331 = vmatpush.msra.mxu0 0.0
      %2332 = vmatpush.msra.mxu0 0.0
      %2333 = vmatpush.msra.mxu0 0.0
      %2334 = vmatpush.msra.mxu0 0.0
      %2335 = vmatpush.msra.mxu0 0.0
      %2336 = vmatpush.msra.mxu0 0.0
      %2337 = vmatpush.msra.mxu0 0.0
      %2338 = vmatpush.msra.mxu0 0.0
      %2339 = vmatpush.msra.mxu0 0.0
      %2340 = vmatpush.msra.mxu0 0.0
      %2341 = vmatpush.msra.mxu0 0.0
      %2342 = vmatpush.msra.mxu0 0.0
      %2343 = vmatpush.msra.mxu0 0.0
      %2344 = vmatpush.msra.mxu0 0.0
      %v2345 = vand.u32 %v711, 4294901760
      %v2346 = vsub.f32 %v711, %v2345
      %v2347 = vand.u32 %v2346, 4294901760
      %2348 = vmatpush.msra.mxu0 %v2347
      %v2349 = vand.u32 %v1546, 4294901760
      %2350 = vmatmul.f32.gmra.mxu0 %v2349
      %v2351 = vpop.f32.mrf.mxu0
      %v2352 = vadd.f32 %v2328, %v2351
      %2353 = vdwg.mxu0
      %2354 = vmatpush.msra.mxu0 0.0
      %2355 = vmatpush.msra.mxu0 0.0
      %2356 = vmatpush.msra.mxu0 0.0
      %2357 = vmatpush.msra.mxu0 0.0
      %2358 = vmatpush.msra.mxu0 0.0
      %2359 = vmatpush.msra.mxu0 0.0
      %2360 = vmatpush.msra.mxu0 0.0
      %2361 = vmatpush.msra.mxu0 0.0
      %2362 = vmatpush.msra.mxu0 0.0
      %2363 = vmatpush.msra.mxu0 0.0
      %2364 = vmatpush.msra.mxu0 0.0
      %2365 = vmatpush.msra.mxu0 0.0
      %2366 = vmatpush.msra.mxu0 0.0
      %2367 = vmatpush.msra.mxu0 0.0
      %2368 = vmatpush.msra.mxu0 0.0
      %v2369 = vand.u32 %v711, 4294901760
      %2370 = vmatpush.msra.mxu0 %v2369
      %v2371 = vand.u32 %v1546, 4294901760
      %2372 = vmatmul.f32.gmra.mxu0 %v2371
      %v2373 = vpop.f32.mrf.mxu0
      %v2374 = vadd.f32 %v2352, %v2373
      %2375 = vdwg.mxu0
      %2376 = vst.msk [vmem:[%s235 + $0x1] sm:$0x1] %vm1543, %v2374
      %p2377 = scmp.lt.s32.totalorder %s17, 1
      %s2378 = scalar_select %p2377, %s17, 1
      %s2379 = smul.addr %s2378, 6
      %s2380 = smul.addr %s2379, 8
      %s2381 = scalar_lea.vmem %s4, %s2380
      %p2382 = scmp.lt.s32.totalorder %s17, 1
      %s2383 = scalar_select %p2382, %s17, 1
      %s2384 = smul.addr %s2383, 2
      %s2385 = scalar_lea.vmem %s5, %s2384
      // Predicated region
      $region37: #{spec_decoder_forward.2} parent=35 // pred_check
        %p2386 = pneg %p124
      $region38: #{spec_decoder_forward.2} parent=35 // pred_check_branch
        %2388 = sbr.rel (%p2386) target = $region40
      $region39: #{spec_decoder_forward.2} parent=35 // pred_region
        _
      $region40: #{spec_decoder_forward.2} parent=35 // pred_fallthru
        _
      // Predicated region
      $region41: #{spec_decoder_forward.2} parent=35 // pred_check
        %p2389 = pneg %p150
      $region42: #{spec_decoder_forward.2} parent=35 // pred_check_branch
        %2391 = sbr.rel (%p2389) target = $region44
      $region43: #{spec_decoder_forward.2} parent=35 // pred_region
        _
      $region44: #{spec_decoder_forward.2} parent=35 // pred_fallthru
        _
    $region36: #{spec_decoder_forward.2} parent=5 // pred_fallthru
      _
    %p2392 = scmp.le.s32.totalorder 2, %s12
    // Predicated region
    $region45: #{spec_decoder_forward.2} parent=5 // pred_check
      %p2393 = pneg %p2392
    $region46: #{spec_decoder_forward.2} parent=5 // pred_check_branch
      %2395 = sbr.rel (%p2393) target = $region48
    $region47: #{spec_decoder_forward.2} parent=5 // pred_region
      %s2396 = ssub.s32 %s12, 2
      // Predicated region
      $region49: #{spec_decoder_forward.2} parent=47 // pred_check
        %p2397 = pneg %p130
      $region50: #{spec_decoder_forward.2} parent=47 // pred_check_branch
        %2399 = sbr.rel (%p2397) target = $region52
      $region51: #{spec_decoder_forward.2} parent=47 // pred_region
        %p2400 = scmp.lt.s32.totalorder %s18, 1
        %s2401 = scalar_select %p2400, %s18, 1
        %s2402 = smul.addr %s2401, 6
        %s2403 = smul.addr %s2402, 8
        %s2404 = scalar_lea.vmem %s4, %s2403
      $region52: #{spec_decoder_forward.2} parent=47 // pred_fallthru
        _
      // Predicated region
      $region53: #{spec_decoder_forward.2} parent=47 // pred_check
        %p2405 = pneg %p156
      $region54: #{spec_decoder_forward.2} parent=47 // pred_check_branch
        %2407 = sbr.rel (%p2405) target = $region56
      $region55: #{spec_decoder_forward.2} parent=47 // pred_region
        %p2408 = scmp.lt.s32.totalorder %s18, 1
        %s2409 = scalar_select %p2408, %s18, 1
        %s2410 = smul.addr %s2409, 2
        %s2411 = scalar_lea.vmem %s5, %s2410
      $region56: #{spec_decoder_forward.2} parent=47 // pred_fallthru
        _
    $region48: #{spec_decoder_forward.2} parent=5 // pred_fallthru
      _
  $region6: #{spec_decoder_forward.2} parent=0 // loop_footer
    %s16 = sadd.s32 1, %s12
  $region7: #{spec_decoder_forward.2} parent=0 // loop_footer_branch
    %11 = sbr.rel target = $region3
  $region8: #{spec_decoder_forward.2} parent=0 // loop_exit
    _

// kernel: spec_decoder_forward.3
$region0: #{spec_decoder_forward.3}
  #allocation0 [shape = 'u32[]', space=smem, size = 0x4, offset = 0x4, fixed_abs, tag = 'smem constant byte address 0x4 - core index']
  #allocation1 [shape = 'u32[72,128]{1,0:T(1,128)}', space=vmem, size = 0x9000, scoped, tag = 'internal scratch']
  %s0 = inlined_call_operand.vmem [shape: f32[2,16,264], index: 0, kind: input, shape index: {}]
  %s1 = inlined_call_operand.vmem [shape: f32[1,264], index: 1, kind: input, shape index: {}]
  %s2 = inlined_call_operand.vmem [shape: f32[1,264], index: 2, kind: input, shape index: {}]
  %s3 = inlined_call_operand.vmem [shape: f32[2,16,264], index: 3, kind: output, shape index: {}]
  %s4 = sld [smem:[#allocation0]]
  $region45: #{spec_decoder_forward.3} parent=0
    _
  %s6 = ssub.s32 1, %s4
  %s7 = scalar_select 0, %s6, %s4
  loop: start=0, step=1, limit=4
  $region2: #{spec_decoder_forward.3} parent=0 // loop_pre_header
    _
  $region3: #{spec_decoder_forward.3} parent=0 // loop_header
    %s9 = sphi 0, %s13
    %p10 = scmp.ge.s32.totalorder %s9, 4
    %s19 = sphi 0, %s21
    %s22 = sphi 0, %s19
    %s23 = sphi 0, %s22
    %s39 = sphi 0, %s23
    %s43 = sphi 0, %s43
    %s45 = sphi 0, %s43
    %s46 = sphi 0, %s45
    %s60 = sphi 0, %s46
    %s64 = sphi 0, %s64
    %s66 = sphi 0, %s64
    %s67 = sphi 0, %s66
    %s81 = sphi 0, %s67
    %s87 = sphi 0, %s89
    %s90 = sphi 0, %s87
    %s91 = sphi 0, %s90
    %s107 = sphi 0, %s91
  $region4: #{spec_decoder_forward.3} parent=0 // loop_header_branch
    %12 = sbr.rel (%p10) target = $region8
  $region5: #{spec_decoder_forward.3} parent=0 // loop_body
    %s14 = ssub.s32 %s9, 1
    %s15 = ssub.s32 %s9, 2
    %s16 = sadd.s32 %s9, 1
    %s17 = ssub.s32 %s9, %s16
    %p18 = scmp.eq.s32.totalorder %s17, 0
    %s20 = sadd.s32 %s19, 1
    %s21 = scalar_select %p18, %s19, %s20
    %p24 = pneg %p18
    %p25 = scmp.eq.s32.totalorder %s9, 1
    %p26 = por %p24, %p25
    %p27 = scmp.ne.s32.totalorder %s19, %s22
    %p28 = scmp.eq.s32.totalorder %s9, 0
    %p29 = por %p27, %p28
    %p30 = scmp.ne.s32.totalorder %s19, %s22
    %p31 = scmp.eq.s32.totalorder %s14, 1
    %p32 = por %p30, %p31
    %p33 = scmp.ne.s32.totalorder %s22, %s23
    %p34 = scmp.eq.s32.totalorder %s14, 0
    %p35 = por %p33, %p34
    %p36 = scmp.ne.s32.totalorder %s22, %s23
    %p37 = scmp.eq.s32.totalorder %s15, 1
    %p38 = por %p36, %p37
    %p40 = scmp.ne.s32.totalorder %s23, %s39
    %p41 = scmp.eq.s32.totalorder %s15, 0
    %p42 = por %p40, %p41
    %s44 = sadd.s32 %s43, 1
    %p47 = scmp.eq.s32.totalorder %s9, 1
    %p48 = scmp.ne.s32.totalorder %s43, %s45
    %p49 = scmp.eq.s32.totalorder %s9, 0
    %p50 = por %p48, %p49
    %p51 = scmp.ne.s32.totalorder %s43, %s45
    %p52 = scmp.eq.s32.totalorder %s14, 1
    %p53 = por %p51, %p52
    %p54 = scmp.ne.s32.totalorder %s45, %s46
    %p55 = scmp.eq.s32.totalorder %s14, 0
    %p56 = por %p54, %p55
    %p57 = scmp.ne.s32.totalorder %s45, %s46
    %p58 = scmp.eq.s32.totalorder %s15, 1
    %p59 = por %p57, %p58
    %p61 = scmp.ne.s32.totalorder %s46, %s60
    %p62 = scmp.eq.s32.totalorder %s15, 0
    %p63 = por %p61, %p62
    %s65 = sadd.s32 %s64, 1
    %p68 = scmp.eq.s32.totalorder %s9, 1
    %p69 = scmp.ne.s32.totalorder %s64, %s66
    %p70 = scmp.eq.s32.totalorder %s9, 0
    %p71 = por %p69, %p70
    %p72 = scmp.ne.s32.totalorder %s64, %s66
    %p73 = scmp.eq.s32.totalorder %s14, 1
    %p74 = por %p72, %p73
    %p75 = scmp.ne.s32.totalorder %s66, %s67
    %p76 = scmp.eq.s32.totalorder %s14, 0
    %p77 = por %p75, %p76
    %p78 = scmp.ne.s32.totalorder %s66, %s67
    %p79 = scmp.eq.s32.totalorder %s15, 1
    %p80 = por %p78, %p79
    %p82 = scmp.ne.s32.totalorder %s67, %s81
    %p83 = scmp.eq.s32.totalorder %s15, 0
    %p84 = por %p82, %p83
    %s85 = ssub.s32 %s9, %s16
    %p86 = scmp.eq.s32.totalorder %s85, 0
    %s88 = sadd.s32 %s87, 1
    %s89 = scalar_select %p86, %s87, %s88
    %p92 = pneg %p86
    %p93 = scmp.eq.s32.totalorder %s9, 1
    %p94 = por %p92, %p93
    %p95 = scmp.ne.s32.totalorder %s87, %s90
    %p96 = scmp.eq.s32.totalorder %s9, 0
    %p97 = por %p95, %p96
    %p98 = scmp.ne.s32.totalorder %s87, %s90
    %p99 = scmp.eq.s32.totalorder %s14, 1
    %p100 = por %p98, %p99
    %p101 = scmp.ne.s32.totalorder %s90, %s91
    %p102 = scmp.eq.s32.totalorder %s14, 0
    %p103 = por %p101, %p102
    %p104 = scmp.ne.s32.totalorder %s90, %s91
    %p105 = scmp.eq.s32.totalorder %s15, 1
    %p106 = por %p104, %p105
    %p108 = scmp.ne.s32.totalorder %s91, %s107
    %p109 = scmp.eq.s32.totalorder %s15, 0
    %p110 = por %p108, %p109
    %p111 = scmp.le.s32.totalorder 1, %s9
    %p112 = scmp.lt.s32.totalorder %s9, 3
    %p113 = pnand %p111, %p112
    %p114 = pneg %p113
    // Predicated region
    $region9: #{spec_decoder_forward.3} parent=5 // pred_check
      _
    $region10: #{spec_decoder_forward.3} parent=5 // pred_check_branch
      %116 = sbr.rel (%p113) target = $region12
    $region11: #{spec_decoder_forward.3} parent=5 // pred_region
      %s117 = ssub.s32 %s9, 1
      // Predicated region
      $region13: #{spec_decoder_forward.3} parent=11 // pred_check
        %p118 = pneg %p56
      $region14: #{spec_decoder_forward.3} parent=11 // pred_check_branch
        %120 = sbr.rel (%p118) target = $region16
      $region15: #{spec_decoder_forward.3} parent=11 // pred_region
        _
      $region16: #{spec_decoder_forward.3} parent=11 // pred_fallthru
        _
      // Predicated region
      $region17: #{spec_decoder_forward.3} parent=11 // pred_check
        %p121 = pneg %p77
      $region18: #{spec_decoder_forward.3} parent=11 // pred_check_branch
        %123 = sbr.rel (%p121) target = $region20
      $region19: #{spec_decoder_forward.3} parent=11 // pred_region
        _
      $region20: #{spec_decoder_forward.3} parent=11 // pred_fallthru
        _
    $region12: #{spec_decoder_forward.3} parent=5 // pred_fallthru
      _
    %p124 = scmp.lt.s32.totalorder %s9, 2
    // Predicated region
    $region21: #{spec_decoder_forward.3} parent=5 // pred_check
      %p125 = pneg %p124
    $region22: #{spec_decoder_forward.3} parent=5 // pred_check_branch
      %127 = sbr.rel (%p125) target = $region24
    $region23: #{spec_decoder_forward.3} parent=5 // pred_region
      // Predicated region
      $region25: #{spec_decoder_forward.3} parent=23 // pred_check
        %p128 = pneg %p29
      $region26: #{spec_decoder_forward.3} parent=23 // pred_check_branch
        %130 = sbr.rel (%p128) target = $region28
      $region27: #{spec_decoder_forward.3} parent=23 // pred_region
        %p131 = scmp.lt.s32.totalorder %s9, 1
        %s132 = scalar_select %p131, %s9, 1
        %s133 = smul.addr %s132, 6
        %s134 = smul.addr %s133, 8
        %s135 = scalar_lea.vmem %s0, %s134
      $region28: #{spec_decoder_forward.3} parent=23 // pred_fallthru
        _
    $region24: #{spec_decoder_forward.3} parent=5 // pred_fallthru
      _
    %p136 = scmp.le.s32.totalorder 1, %s9
    %p137 = scmp.lt.s32.totalorder %s9, 3
    %p138 = pnand %p136, %p137
    %p139 = pneg %p138
    // Predicated region
    $region29: #{spec_decoder_forward.3} parent=5 // pred_check
      _
    $region30: #{spec_decoder_forward.3} parent=5 // pred_check_branch
      %141 = sbr.rel (%p138) target = $region32
    $region31: #{spec_decoder_forward.3} parent=5 // pred_region
      %s142 = ssub.s32 %s9, 1
      %p143 = scmp.lt.s32.totalorder %s14, 1
      %s144 = scalar_select %p143, %s14, 1
      %s145 = smul.addr %s144, 6
      %s146 = smul.addr %s145, 8
      %s147 = scalar_lea.vmem %s0, %s146
      %p148 = pneg %p35
      %p149 = pneg %p32
      %p150 = pneg %p56
      %p151 = pneg %p53
      %p152 = pneg %p77
      %p153 = pneg %p74
      %p154 = pneg %p103
      %p155 = pneg %p100
      %p156 = scmp.lt.s32.totalorder %s14, 1
      %s157 = scalar_select %p156, %s14, 1
      %s158 = smul.addr %s157, 6
      %s159 = smul.addr %s158, 8
      %s160 = scalar_lea.vmem %s3, %s159
      %p161 = scmp.lt.s32.totalorder %s14, 1
      %s162 = scalar_select %p161, %s14, 1
      %s163 = smul.addr %s162, 6
      %s164 = smul.addr %s163, 8
      %s165 = scalar_lea.vmem %s0, %s164
      %p166 = scmp.lt.s32.totalorder %s14, 1
      %s167 = scalar_select %p166, %s14, 1
      %s168 = smul.addr %s167, 6
      %s169 = smul.addr %s168, 8
      %s170 = scalar_lea.vmem %s3, %s169
      %v171 = vld [vmem:[%s165] sm:$0xff]
      %v172 = vld [vmem:[%s165 + $0x8] sm:$0xff]
      %v173 = vld [vmem:[%s165 + $0x10] sm:$0xff]
      %v174 = vld [vmem:[%s165 + $0x18] sm:$0xff]
      %v175 = vld [vmem:[%s165 + $0x20] sm:$0xff]
      %v176 = vld [vmem:[%s165 + $0x28] sm:$0xff]
      %v177 = vld [vmem:[%s1] sm:$0x7]
      %v179 = vperm.slane %v177, 0
      %v180 = vperm.slane %v177, 1
      %v181 = vperm.slane %v177, 2
      %v185 = vmul.f32 %v171, %v179
      %v186 = vmul.f32 %v172, %v180
      %v187 = vmul.f32 %v173, %v181
      %v188 = vmul.f32 %v174, %v179
      %v189 = vmul.f32 %v175, %v180
      %v190 = vmul.f32 %v176, %v181
      %v191 = vld [vmem:[%s2] sm:$0x7]
      %v193 = vperm.slane %v191, 0
      %v194 = vperm.slane %v191, 1
      %v195 = vperm.slane %v191, 2
      %v199 = vadd.f32 %v185, %v193
      %v200 = vadd.f32 %v186, %v194
      %v201 = vadd.f32 %v187, %v195
      %v202 = vadd.f32 %v188, %v193
      %v203 = vadd.f32 %v189, %v194
      %v204 = vadd.f32 %v190, %v195
      %vm205 = vcmp.gt.f32.partialorder %v199, 0.0
      %vm206 = vcmp.gt.f32.partialorder %v200, 0.0
      %vm207 = vcmp.gt.f32.partialorder %v201, 0.0
      %vm208 = vcmp.gt.f32.partialorder %v202, 0.0
      %vm209 = vcmp.gt.f32.partialorder %v203, 0.0
      %vm210 = vcmp.gt.f32.partialorder %v204, 0.0
      %v211 = vmin.f32 %v199, 0.0
      %v212 = vmin.f32 %v200, 0.0
      %v213 = vmin.f32 %v201, 0.0
      %v214 = vmin.f32 %v202, 0.0
      %v215 = vmin.f32 %v203, 0.0
      %v216 = vmin.f32 %v204, 0.0
      %v217 = vmul.f32 %v211, 1.442695
      %v218 = vpow.pop %v217
      %v219 = vmul.f32 %v212, 1.442695
      %v220 = vpow.pop %v219
      %v221 = vmul.f32 %v213, 1.442695
      %v222 = vpow.pop %v221
      %v223 = vmul.f32 %v214, 1.442695
      %v224 = vpow.pop %v223
      %v225 = vmul.f32 %v215, 1.442695
      %v226 = vpow.pop %v225
      %v227 = vmul.f32 %v216, 1.442695
      %v228 = vpow.pop %v227
      %v229 = vsub.f32 %v218, 1.0
      %v230 = vsub.f32 %v220, 1.0
      %v231 = vsub.f32 %v222, 1.0
      %v232 = vsub.f32 %v224, 1.0
      %v233 = vsub.f32 %v226, 1.0
      %v234 = vsub.f32 %v228, 1.0
      %v235 = vsel %vm205, %v199, %v229
      %v236 = vsel %vm206, %v200, %v230
      %v237 = vsel %vm207, %v201, %v231
      %v238 = vsel %vm208, %v202, %v232
      %v239 = vsel %vm209, %v203, %v233
      %v240 = vsel %vm210, %v204, %v234
      %241 = vst [vmem:[%s170] sm:$0xff] %v235
      %242 = vst [vmem:[%s170 + $0x8] sm:$0xff] %v236
      %vm243 = vcmask 64512
      %244 = vst.msk [vmem:[%s170 + $0x10] sm:$0xff] %vm243, %v237
      %245 = vst [vmem:[%s170 + $0x18] sm:$0xff] %v238
      %246 = vst [vmem:[%s170 + $0x20] sm:$0xff] %v239
      %247 = vst.msk [vmem:[%s170 + $0x28] sm:$0xff] %vm243, %v240
      %p248 = scmp.lt.s32.totalorder %s14, 1
      %s249 = scalar_select %p248, %s14, 1
      %s250 = smul.addr %s249, 6
      %s251 = smul.addr %s250, 8
      %s252 = scalar_lea.vmem %s3, %s251
      // Predicated region
      $region33: #{spec_decoder_forward.3} parent=31 // pred_check
        %p253 = pneg %p100
      $region34: #{spec_decoder_forward.3} parent=31 // pred_check_branch
        %255 = sbr.rel (%p253) target = $region36
      $region35: #{spec_decoder_forward.3} parent=31 // pred_region
        _
      $region36: #{spec_decoder_forward.3} parent=31 // pred_fallthru
        _
    $region32: #{spec_decoder_forward.3} parent=5 // pred_fallthru
      _
    %p256 = scmp.le.s32.totalorder 2, %s9
    // Predicated region
    $region37: #{spec_decoder_forward.3} parent=5 // pred_check
      %p257 = pneg %p256
    $region38: #{spec_decoder_forward.3} parent=5 // pred_check_branch
      %259 = sbr.rel (%p257) target = $region40
    $region39: #{spec_decoder_forward.3} parent=5 // pred_region
      %s260 = ssub.s32 %s9, 2
      // Predicated region
      $region41: #{spec_decoder_forward.3} parent=39 // pred_check
        %p261 = pneg %p106
      $region42: #{spec_decoder_forward.3} parent=39 // pred_check_branch
        %263 = sbr.rel (%p261) target = $region44
      $region43: #{spec_decoder_forward.3} parent=39 // pred_region
        %p264 = scmp.lt.s32.totalorder %s15, 1
        %s265 = scalar_select %p264, %s15, 1
        %s266 = smul.addr %s265, 6
        %s267 = smul.addr %s266, 8
        %s268 = scalar_lea.vmem %s3, %s267
      $region44: #{spec_decoder_forward.3} parent=39 // pred_fallthru
        _
    $region40: #{spec_decoder_forward.3} parent=5 // pred_fallthru
      _
  $region6: #{spec_decoder_forward.3} parent=0 // loop_footer
    %s13 = sadd.s32 1, %s9
  $region7: #{spec_decoder_forward.3} parent=0 // loop_footer_branch
    %8 = sbr.rel target = $region3
  $region8: #{spec_decoder_forward.3} parent=0 // loop_exit
    _

</llo_original>
